<compile_context>
chip_gen: v5e
topology: v5e:2x2
jax: 0.10.0
libtpu: 0.0.40
codegen_flags: <defaults>
</compile_context>

<pallas_src>
import functools

import jax
import jax.numpy as jnp
from jax.experimental import pallas as pl
from jax.experimental.pallas import tpu as pltpu


# ---------------------------------------------------------------------------
# Fused kernel: one grid step = one lane-packed group of `lane_pack` images.
#   x_ref   : (1, H, L)     input tile, lane = w*E + img*C + c, E = lane_pack*C
#   w0_ref  : (k0*k0, L)    conv0 depthwise weights, lane-tiled
#   b0_ref  : (1, L)
#   ws_ref  : (k1*k1, L)    conv_spatial depthwise weights, lane-tiled
#   bs_ref  : (1, L)
#   wfg_ref : (L, 2L)       block-diagonal 1x1 weights, f and g fused
#   bfg_ref : (1, 2L)
#   o_ref   : (1, H, L)     sigmoid(g) * f
#   pad0/1  : VMEM scratch holding zero-padded intermediates (never leave VMEM)
# ---------------------------------------------------------------------------
def _fused_lka_kernel(x_ref, w0_ref, b0_ref, ws_ref, bs_ref,
                      wfg_ref, bfg_ref, o_ref, pad0_ref, pad1_ref,
                      *, k0, k1, dil, H, E, L, p0, ps):
    # Halos only have to be zeroed once: the interior writes below cover the
    # identical window every grid step ("arbitrary" grid axis => sequential =>
    # step 0 runs first), so the halo stays zero for all later steps.
    @pl.when(pl.program_id(0) == 0)
    def _zero_halos():
        pad0_ref[...] = jnp.zeros_like(pad0_ref)
        pad1_ref[...] = jnp.zeros_like(pad1_ref)

    # ---- stage 1: depthwise conv0 (k0 x k0, dilation 1, 'same') -----------
    pad0_ref[p0:p0 + H, p0 * E:p0 * E + L] = x_ref[0].astype(jnp.float32)
    w0 = w0_ref[...]                                     # load once
    acc0 = jnp.zeros((H, L), jnp.float32)
    for i in range(k0):                                  # static unroll (VPU FMAs)
        for j in range(k0):
            acc0 = acc0 + pad0_ref[i:i + H, j * E:j * E + L] * w0[i * k0 + j]
    acc0 = acc0 + b0_ref[...]

    # ---- stage 2: depthwise dilated conv_spatial (k1 x k1, dilation dil) ---
    pad1_ref[ps:ps + H, ps * E:ps * E + L] = acc0
    ws = ws_ref[...]                                     # load once
    acc1 = jnp.zeros((H, L), jnp.float32)
    for i in range(k1):
        for j in range(k1):
            acc1 = acc1 + (
                pad1_ref[i * dil:i * dil + H, j * dil * E:j * dil * E + L]
                * ws[i * k1 + j])
    acc1 = acc1 + bs_ref[...]

    # ---- stage 3: fused 1x1 conv (single (L,2L) matmul) + sigmoid gate -----
    fg = jnp.dot(acc1, wfg_ref[...],
                 preferred_element_type=jnp.float32) + bfg_ref[...]
    f = fg[:, :L]
    g = fg[:, L:]
    o_ref[0] = (jax.nn.sigmoid(g) * f).astype(o_ref.dtype)


# ---------------------------------------------------------------------------
# Factory: prepare weights ONCE, return a jitted apply(x_nchw) function.
# ---------------------------------------------------------------------------
def make_attention_module(params, *, H, W, dilation, lane_pack=None):
    C = params["b0"].shape[0]
    k0 = params["w0"].shape[0]          # conv0 kernel size (d_k)
    k1 = params["ws"].shape[0]          # conv_spatial kernel size (dd_k)

    # Pack enough images along the lane axis to hit 128-lane density.
    if lane_pack is None:
        wc = W * C
        lane_pack = 128 // wc if (wc < 128 and 128 % wc == 0) else 1

    E = lane_pack * C                   # lanes per pixel position
    L = W * E                           # lanes per row of a packed group
    R = W * lane_pack                   # pixel-image slots per row
    p0 = (k0 - 1) // 2                  # conv0 'same' pad
    ps = dilation * (k1 - 1) // 2       # conv_spatial 'same' pad

    # ---- hoisted weight preparation (runs once, not in the hot path) -------
    w0_t = jnp.tile(params["w0"].reshape(k0 * k0, C), (1, R))       # (k0*k0, L)
    b0_t = jnp.tile(params["b0"], R).reshape(1, L)
    ws_t = jnp.tile(params["ws"].reshape(k1 * k1, C), (1, R))       # (k1*k1, L)
    bs_t = jnp.tile(params["bs"], R).reshape(1, L)

    # Block-diagonal 1x1 weights acting on the packed lane layout, f|g fused:
    #   Wf[t*C+k, t*C+c] = w1[k, c],  Wg[t*C+k, t*C+c] = w1[k, C+c]
    eye = jnp.eye(R, dtype=params["w1"].dtype)
    wf_big = jnp.einsum("wv,kc->wkvc", eye, params["w1"][:, :C]).reshape(L, L)
    wg_big = jnp.einsum("wv,kc->wkvc", eye, params["w1"][:, C:]).reshape(L, L)
    wfg = jnp.concatenate([wf_big, wg_big], axis=1)                 # (L, 2L)
    bfg = jnp.concatenate([jnp.tile(params["b1"][:C], R),
                           jnp.tile(params["b1"][C:], R)]).reshape(1, 2 * L)

    kern = functools.partial(_fused_lka_kernel, k0=k0, k1=k1, dil=dilation,
                             H=H, E=E, L=L, p0=p0, ps=ps)

    @jax.jit
    def apply(x_nchw):
        N = x_nchw.shape[0]
        pad_n = (-N) % lane_pack
        if pad_n:
            x_nchw_p = jnp.concatenate(
                [x_nchw, jnp.zeros((pad_n,) + x_nchw.shape[1:], x_nchw.dtype)],
                axis=0)
        else:
            x_nchw_p = x_nchw
        Np = N + pad_n
        G = Np // lane_pack                      # lane-packed groups = grid size

        # NCHW -> (G, H, L) lane-dense, pixel-interleaved packed layout:
        #   lane = w*E + img*C + c,  image index n = g*lane_pack + img
        x_flat = (x_nchw_p.reshape(G, lane_pack, C, H, W)
                  .transpose(0, 3, 4, 1, 2)
                  .reshape(G, H, L))

        out_flat = pl.pallas_call(
            kern,
            out_shape=jax.ShapeDtypeStruct((G, H, L), x_nchw.dtype),
            grid=(G,),
            in_specs=[
                pl.BlockSpec((1, H, L), lambda m: (m, 0, 0)),
                pl.BlockSpec((k0 * k0, L), lambda m: (0, 0)),
                pl.BlockSpec((1, L), lambda m: (0, 0)),
                pl.BlockSpec((k1 * k1, L), lambda m: (0, 0)),
                pl.BlockSpec((1, L), lambda m: (0, 0)),
                pl.BlockSpec((L, 2 * L), lambda m: (0, 0)),
                pl.BlockSpec((1, 2 * L), lambda m: (0, 0)),
            ],
            out_specs=pl.BlockSpec((1, H, L), lambda m: (m, 0, 0)),
            scratch_shapes=[
                pltpu.VMEM((H + 2 * p0, (W + 2 * p0) * E), jnp.float32),
                pltpu.VMEM((H + 2 * ps, (W + 2 * ps) * E), jnp.float32),
            ],
            # "arbitrary": sequential grid => zero-once halo init is valid;
            # measured cost vs "parallel" is ~zero for this kernel.
            compiler_params=pltpu.CompilerParams(
                dimension_semantics=("arbitrary",)),
        )(x_flat, w0_t, b0_t, ws_t, bs_t, wfg, bfg)

        # packed (G, H, L) -> NCHW, drop batch padding.
        out = (out_flat.reshape(G, H, W, lane_pack, C)
               .transpose(0, 3, 4, 1, 2)
               .reshape(Np, C, H, W))
        return out[:N]

    return apply


# ---------------------------------------------------------------------------
# Pure-JAX reference (lax.conv) for correctness check.
# ---------------------------------------------------------------------------
def reference(x_nchw, params, *, dilation):
    def dwconv(x, w, b, dil):
        C = x.shape[1]
        w_oihw = jnp.transpose(w, (2, 0, 1))[:, None, :, :]        # (C,1,kh,kw)
        kh = w.shape[0]
        pad = dil * (kh - 1) // 2
        y = jax.lax.conv_general_dilated(
            x, w_oihw, window_strides=(1, 1),
            padding=((pad, pad), (pad, pad)),
            rhs_dilation=(dil, dil),
            feature_group_count=C,
            dimension_numbers=("NCHW", "OIHW", "NCHW"))
        return y + b[None, :, None, None]

    a = dwconv(x_nchw, params["w0"], params["b0"], 1)
    a = dwconv(a, params["ws"], params["bs"], dilation)
    w1_oihw = jnp.transpose(params["w1"], (1, 0))[:, :, None, None]  # (2C,C,1,1)
    fg = jax.lax.conv_general_dilated(
        a, w1_oihw, (1, 1), ((0, 0), (0, 0)),
        dimension_numbers=("NCHW", "OIHW", "NCHW")) + params["b1"][None, :, None, None]
    C = x_nchw.shape[1]
    f, g = fg[:, :C], fg[:, C:]
    return jax.nn.sigmoid(g) * f


if __name__ == "__main__":
    # Module hyperparams (matching AttentionModule(dim, kernel_size, dilation)):
    dim, kernel_size, dilation = 4, 9, 3
    d_k = 2 * dilation - 1                                              # 5
    dd_k = kernel_size // dilation + (kernel_size // dilation % 2 - 1)  # 3

    N, H, W = 2, 16, 16

    key = jax.random.PRNGKey(0)
    k = jax.random.split(key, 7)
    params = {
        # depthwise conv0: PyTorch weight (dim,1,d_k,d_k) stored as (d_k,d_k,dim)
        "w0": jax.random.normal(k[0], (d_k, d_k, dim), jnp.float32) * 0.1,
        "b0": jax.random.normal(k[1], (dim,), jnp.float32) * 0.1,
        # depthwise conv_spatial: (dim,1,dd_k,dd_k) stored as (dd_k,dd_k,dim)
        "ws": jax.random.normal(k[2], (dd_k, dd_k, dim), jnp.float32) * 0.1,
        "bs": jax.random.normal(k[3], (dim,), jnp.float32) * 0.1,
        # 1x1 conv1: (2*dim, dim, 1, 1) stored as (dim, 2*dim)
        "w1": jax.random.normal(k[4], (dim, 2 * dim), jnp.float32) * 0.1,
        "b1": jax.random.normal(k[5], (2 * dim,), jnp.float32) * 0.1,
    }
    x = jax.random.normal(k[6], (N, dim, H, W), jnp.float32)   # NCHW, like PyTorch

    attention_module = make_attention_module(params, H=H, W=W, dilation=dilation)
    out = jax.block_until_ready(attention_module(x))

    ref = jax.block_until_ready(reference(x, params, dilation=dilation))
    assert out.shape == (N, dim, H, W)
    assert jnp.allclose(out, ref, atol=1e-4, rtol=1e-4), float(jnp.max(jnp.abs(out - ref)))

    print("KERNEL_OK")
</pallas_src>

<mosaic_0001>
module attributes {stable_mosaic.version = 11 : i64} {
  func.func @_fused_lka_kernel(%arg0: i32, %arg1: memref<1x16x128xf32, #tpu.memory_space<vmem>>, %arg2: memref<25x128xf32, #tpu.memory_space<vmem>>, %arg3: memref<1x128xf32, #tpu.memory_space<vmem>>, %arg4: memref<9x128xf32, #tpu.memory_space<vmem>>, %arg5: memref<1x128xf32, #tpu.memory_space<vmem>>, %arg6: memref<128x256xf32, #tpu.memory_space<vmem>>, %arg7: memref<1x256xf32, #tpu.memory_space<vmem>>, %arg8: memref<1x16x128xf32, #tpu.memory_space<vmem>>, %arg9: memref<20x160xf32, #tpu.memory_space<vmem>>, %arg10: memref<22x176xf32, #tpu.memory_space<vmem>>) attributes {dimension_semantics = [#tpu.dimension_semantics<arbitrary>], iteration_bounds = array<i64: 1>, scalar_prefetch = 0 : i64, scratch_operands = 2 : i64, tpu.core_type = #tpu.core_type<tc>, window_params = [{transform_indices = @transform_0, window_bounds = array<i64: 1, 16, 128>}, {pipeline_mode = #tpu.pipeline_mode<synchronous>, transform_indices = @transform_1, window_bounds = array<i64: 25, 128>}, {pipeline_mode = #tpu.pipeline_mode<synchronous>, transform_indices = @transform_2, window_bounds = array<i64: 1, 128>}, {pipeline_mode = #tpu.pipeline_mode<synchronous>, transform_indices = @transform_3, window_bounds = array<i64: 9, 128>}, {pipeline_mode = #tpu.pipeline_mode<synchronous>, transform_indices = @transform_4, window_bounds = array<i64: 1, 128>}, {pipeline_mode = #tpu.pipeline_mode<synchronous>, transform_indices = @transform_5, window_bounds = array<i64: 128, 256>}, {pipeline_mode = #tpu.pipeline_mode<synchronous>, transform_indices = @transform_6, window_bounds = array<i64: 1, 256>}, {transform_indices = @transform_7, window_bounds = array<i64: 1, 16, 128>}]} {
    %c0_i32 = arith.constant 0 : i32
    %0 = arith.cmpi eq, %arg0, %c0_i32 : i32
    %1 = arith.extui %0 : i1 to i32
    %c0_i32_0 = arith.constant 0 : i32
    %2 = arith.cmpi ne, %1, %c0_i32_0 : i32
    scf.if %2 {
      %cst_83 = arith.constant 0.000000e+00 : f32
      %271 = vector.broadcast %cst_83 : f32 to vector<20x160xf32>
      %c0_84 = arith.constant 0 : index
      %c0_85 = arith.constant 0 : index
      %272 = vector.load %arg9[%c0_84, %c0_85] : memref<20x160xf32, #tpu.memory_space<vmem>>, vector<20x160xf32>
      tpu.vector_store %arg9[%c0_84, %c0_85], %271 {strides = array<i32>} : memref<20x160xf32, #tpu.memory_space<vmem>>, vector<20x160xf32>,
      %cst_86 = arith.constant 0.000000e+00 : f32
      %273 = vector.broadcast %cst_86 : f32 to vector<22x176xf32>
      %c0_87 = arith.constant 0 : index
      %c0_88 = arith.constant 0 : index
      %274 = vector.load %arg10[%c0_87, %c0_88] : memref<22x176xf32, #tpu.memory_space<vmem>>, vector<22x176xf32>
      tpu.vector_store %arg10[%c0_87, %c0_88], %273 {strides = array<i32>} : memref<22x176xf32, #tpu.memory_space<vmem>>, vector<22x176xf32>,
    } else {
    }
    %c0 = arith.constant 0 : index
    %c0_1 = arith.constant 0 : index
    %c0_2 = arith.constant 0 : index
    %3 = vector.load %arg1[%c0, %c0_1, %c0_2] : memref<1x16x128xf32, #tpu.memory_space<vmem>>, vector<1x16x128xf32>
    %4 = vector.shape_cast %3 : vector<1x16x128xf32> to vector<16x128xf32>
    %c2 = arith.constant 2 : index
    %c16 = arith.constant 16 : index
    %5 = vector.load %arg9[%c2, %c16] : memref<20x160xf32, #tpu.memory_space<vmem>>, vector<16x128xf32>
    tpu.vector_store %arg9[%c2, %c16], %4 {strides = array<i32>} : memref<20x160xf32, #tpu.memory_space<vmem>>, vector<16x128xf32>,
    %c0_3 = arith.constant 0 : index
    %c0_4 = arith.constant 0 : index
    %6 = vector.load %arg2[%c0_3, %c0_4] : memref<25x128xf32, #tpu.memory_space<vmem>>, vector<25x128xf32>
    %cst = arith.constant 0.000000e+00 : f32
    %7 = vector.broadcast %cst : f32 to vector<16x128xf32>
    %c0_5 = arith.constant 0 : index
    %c0_6 = arith.constant 0 : index
    %8 = vector.load %arg9[%c0_5, %c0_6] : memref<20x160xf32, #tpu.memory_space<vmem>>, vector<16x128xf32>
    %9 = vector.extract_strided_slice %6 {offsets = [0, 0], sizes = [1, 128], strides = [1, 1]} : vector<25x128xf32> to vector<1x128xf32>
    %10 = vector.shape_cast %9 : vector<1x128xf32> to vector<128xf32>
    %11 = vector.shape_cast %10 : vector<128xf32> to vector<1x128xf32>
    %12 = vector.broadcast %11 : vector<1x128xf32> to vector<16x128xf32>
    %13 = arith.mulf %8, %12 : vector<16x128xf32>
    %14 = arith.addf %7, %13 : vector<16x128xf32>
    %c0_7 = arith.constant 0 : index
    %c8 = arith.constant 8 : index
    %15 = vector.load %arg9[%c0_7, %c8] : memref<20x160xf32, #tpu.memory_space<vmem>>, vector<16x128xf32>
    %16 = vector.extract_strided_slice %6 {offsets = [1, 0], sizes = [1, 128], strides = [1, 1]} : vector<25x128xf32> to vector<1x128xf32>
    %17 = vector.shape_cast %16 : vector<1x128xf32> to vector<128xf32>
    %18 = vector.shape_cast %17 : vector<128xf32> to vector<1x128xf32>
    %19 = vector.broadcast %18 : vector<1x128xf32> to vector<16x128xf32>
    %20 = arith.mulf %15, %19 : vector<16x128xf32>
    %21 = arith.addf %14, %20 : vector<16x128xf32>
    %c0_8 = arith.constant 0 : index
    %c16_9 = arith.constant 16 : index
    %22 = vector.load %arg9[%c0_8, %c16_9] : memref<20x160xf32, #tpu.memory_space<vmem>>, vector<16x128xf32>
    %23 = vector.extract_strided_slice %6 {offsets = [2, 0], sizes = [1, 128], strides = [1, 1]} : vector<25x128xf32> to vector<1x128xf32>
    %24 = vector.shape_cast %23 : vector<1x128xf32> to vector<128xf32>
    %25 = vector.shape_cast %24 : vector<128xf32> to vector<1x128xf32>
    %26 = vector.broadcast %25 : vector<1x128xf32> to vector<16x128xf32>
    %27 = arith.mulf %22, %26 : vector<16x128xf32>
    %28 = arith.addf %21, %27 : vector<16x128xf32>
    %c0_10 = arith.constant 0 : index
    %c24 = arith.constant 24 : index
    %29 = vector.load %arg9[%c0_10, %c24] : memref<20x160xf32, #tpu.memory_space<vmem>>, vector<16x128xf32>
    %30 = vector.extract_strided_slice %6 {offsets = [3, 0], sizes = [1, 128], strides = [1, 1]} : vector<25x128xf32> to vector<1x128xf32>
    %31 = vector.shape_cast %30 : vector<1x128xf32> to vector<128xf32>
    %32 = vector.shape_cast %31 : vector<128xf32> to vector<1x128xf32>
    %33 = vector.broadcast %32 : vector<1x128xf32> to vector<16x128xf32>
    %34 = arith.mulf %29, %33 : vector<16x128xf32>
    %35 = arith.addf %28, %34 : vector<16x128xf32>
    %c0_11 = arith.constant 0 : index
    %c32 = arith.constant 32 : index
    %36 = vector.load %arg9[%c0_11, %c32] : memref<20x160xf32, #tpu.memory_space<vmem>>, vector<16x128xf32>
    %37 = vector.extract_strided_slice %6 {offsets = [4, 0], sizes = [1, 128], strides = [1, 1]} : vector<25x128xf32> to vector<1x128xf32>
    %38 = vector.shape_cast %37 : vector<1x128xf32> to vector<128xf32>
    %39 = vector.shape_cast %38 : vector<128xf32> to vector<1x128xf32>
    %40 = vector.broadcast %39 : vector<1x128xf32> to vector<16x128xf32>
    %41 = arith.mulf %36, %40 : vector<16x128xf32>
    %42 = arith.addf %35, %41 : vector<16x128xf32>
    %c1 = arith.constant 1 : index
    %c0_12 = arith.constant 0 : index
    %43 = vector.load %arg9[%c1, %c0_12] : memref<20x160xf32, #tpu.memory_space<vmem>>, vector<16x128xf32>
    %44 = vector.extract_strided_slice %6 {offsets = [5, 0], sizes = [1, 128], strides = [1, 1]} : vector<25x128xf32> to vector<1x128xf32>
    %45 = vector.shape_cast %44 : vector<1x128xf32> to vector<128xf32>
    %46 = vector.shape_cast %45 : vector<128xf32> to vector<1x128xf32>
    %47 = vector.broadcast %46 : vector<1x128xf32> to vector<16x128xf32>
    %48 = arith.mulf %43, %47 : vector<16x128xf32>
    %49 = arith.addf %42, %48 : vector<16x128xf32>
    %c1_13 = arith.constant 1 : index
    %c8_14 = arith.constant 8 : index
    %50 = vector.load %arg9[%c1_13, %c8_14] : memref<20x160xf32, #tpu.memory_space<vmem>>, vector<16x128xf32>
    %51 = vector.extract_strided_slice %6 {offsets = [6, 0], sizes = [1, 128], strides = [1, 1]} : vector<25x128xf32> to vector<1x128xf32>
    %52 = vector.shape_cast %51 : vector<1x128xf32> to vector<128xf32>
    %53 = vector.shape_cast %52 : vector<128xf32> to vector<1x128xf32>
    %54 = vector.broadcast %53 : vector<1x128xf32> to vector<16x128xf32>
    %55 = arith.mulf %50, %54 : vector<16x128xf32>
    %56 = arith.addf %49, %55 : vector<16x128xf32>
    %c1_15 = arith.constant 1 : index
    %c16_16 = arith.constant 16 : index
    %57 = vector.load %arg9[%c1_15, %c16_16] : memref<20x160xf32, #tpu.memory_space<vmem>>, vector<16x128xf32>
    %58 = vector.extract_strided_slice %6 {offsets = [7, 0], sizes = [1, 128], strides = [1, 1]} : vector<25x128xf32> to vector<1x128xf32>
    %59 = vector.shape_cast %58 : vector<1x128xf32> to vector<128xf32>
    %60 = vector.shape_cast %59 : vector<128xf32> to vector<1x128xf32>
    %61 = vector.broadcast %60 : vector<1x128xf32> to vector<16x128xf32>
    %62 = arith.mulf %57, %61 : vector<16x128xf32>
    %63 = arith.addf %56, %62 : vector<16x128xf32>
    %c1_17 = arith.constant 1 : index
    %c24_18 = arith.constant 24 : index
    %64 = vector.load %arg9[%c1_17, %c24_18] : memref<20x160xf32, #tpu.memory_space<vmem>>, vector<16x128xf32>
    %65 = vector.extract_strided_slice %6 {offsets = [8, 0], sizes = [1, 128], strides = [1, 1]} : vector<25x128xf32> to vector<1x128xf32>
    %66 = vector.shape_cast %65 : vector<1x128xf32> to vector<128xf32>
    %67 = vector.shape_cast %66 : vector<128xf32> to vector<1x128xf32>
    %68 = vector.broadcast %67 : vector<1x128xf32> to vector<16x128xf32>
    %69 = arith.mulf %64, %68 : vector<16x128xf32>
    %70 = arith.addf %63, %69 : vector<16x128xf32>
    %c1_19 = arith.constant 1 : index
    %c32_20 = arith.constant 32 : index
    %71 = vector.load %arg9[%c1_19, %c32_20] : memref<20x160xf32, #tpu.memory_space<vmem>>, vector<16x128xf32>
    %72 = vector.extract_strided_slice %6 {offsets = [9, 0], sizes = [1, 128], strides = [1, 1]} : vector<25x128xf32> to vector<1x128xf32>
    %73 = vector.shape_cast %72 : vector<1x128xf32> to vector<128xf32>
    %74 = vector.shape_cast %73 : vector<128xf32> to vector<1x128xf32>
    %75 = vector.broadcast %74 : vector<1x128xf32> to vector<16x128xf32>
    %76 = arith.mulf %71, %75 : vector<16x128xf32>
    %77 = arith.addf %70, %76 : vector<16x128xf32>
    %c2_21 = arith.constant 2 : index
    %c0_22 = arith.constant 0 : index
    %78 = vector.load %arg9[%c2_21, %c0_22] : memref<20x160xf32, #tpu.memory_space<vmem>>, vector<16x128xf32>
    %79 = vector.extract_strided_slice %6 {offsets = [10, 0], sizes = [1, 128], strides = [1, 1]} : vector<25x128xf32> to vector<1x128xf32>
    %80 = vector.shape_cast %79 : vector<1x128xf32> to vector<128xf32>
    %81 = vector.shape_cast %80 : vector<128xf32> to vector<1x128xf32>
    %82 = vector.broadcast %81 : vector<1x128xf32> to vector<16x128xf32>
    %83 = arith.mulf %78, %82 : vector<16x128xf32>
    %84 = arith.addf %77, %83 : vector<16x128xf32>
    %c2_23 = arith.constant 2 : index
    %c8_24 = arith.constant 8 : index
    %85 = vector.load %arg9[%c2_23, %c8_24] : memref<20x160xf32, #tpu.memory_space<vmem>>, vector<16x128xf32>
    %86 = vector.extract_strided_slice %6 {offsets = [11, 0], sizes = [1, 128], strides = [1, 1]} : vector<25x128xf32> to vector<1x128xf32>
    %87 = vector.shape_cast %86 : vector<1x128xf32> to vector<128xf32>
    %88 = vector.shape_cast %87 : vector<128xf32> to vector<1x128xf32>
    %89 = vector.broadcast %88 : vector<1x128xf32> to vector<16x128xf32>
    %90 = arith.mulf %85, %89 : vector<16x128xf32>
    %91 = arith.addf %84, %90 : vector<16x128xf32>
    %c2_25 = arith.constant 2 : index
    %c16_26 = arith.constant 16 : index
    %92 = vector.load %arg9[%c2_25, %c16_26] : memref<20x160xf32, #tpu.memory_space<vmem>>, vector<16x128xf32>
    %93 = vector.extract_strided_slice %6 {offsets = [12, 0], sizes = [1, 128], strides = [1, 1]} : vector<25x128xf32> to vector<1x128xf32>
    %94 = vector.shape_cast %93 : vector<1x128xf32> to vector<128xf32>
    %95 = vector.shape_cast %94 : vector<128xf32> to vector<1x128xf32>
    %96 = vector.broadcast %95 : vector<1x128xf32> to vector<16x128xf32>
    %97 = arith.mulf %92, %96 : vector<16x128xf32>
    %98 = arith.addf %91, %97 : vector<16x128xf32>
    %c2_27 = arith.constant 2 : index
    %c24_28 = arith.constant 24 : index
    %99 = vector.load %arg9[%c2_27, %c24_28] : memref<20x160xf32, #tpu.memory_space<vmem>>, vector<16x128xf32>
    %100 = vector.extract_strided_slice %6 {offsets = [13, 0], sizes = [1, 128], strides = [1, 1]} : vector<25x128xf32> to vector<1x128xf32>
    %101 = vector.shape_cast %100 : vector<1x128xf32> to vector<128xf32>
    %102 = vector.shape_cast %101 : vector<128xf32> to vector<1x128xf32>
    %103 = vector.broadcast %102 : vector<1x128xf32> to vector<16x128xf32>
    %104 = arith.mulf %99, %103 : vector<16x128xf32>
    %105 = arith.addf %98, %104 : vector<16x128xf32>
    %c2_29 = arith.constant 2 : index
    %c32_30 = arith.constant 32 : index
    %106 = vector.load %arg9[%c2_29, %c32_30] : memref<20x160xf32, #tpu.memory_space<vmem>>, vector<16x128xf32>
    %107 = vector.extract_strided_slice %6 {offsets = [14, 0], sizes = [1, 128], strides = [1, 1]} : vector<25x128xf32> to vector<1x128xf32>
    %108 = vector.shape_cast %107 : vector<1x128xf32> to vector<128xf32>
    %109 = vector.shape_cast %108 : vector<128xf32> to vector<1x128xf32>
    %110 = vector.broadcast %109 : vector<1x128xf32> to vector<16x128xf32>
    %111 = arith.mulf %106, %110 : vector<16x128xf32>
    %112 = arith.addf %105, %111 : vector<16x128xf32>
    %c3 = arith.constant 3 : index
    %c0_31 = arith.constant 0 : index
    %113 = vector.load %arg9[%c3, %c0_31] : memref<20x160xf32, #tpu.memory_space<vmem>>, vector<16x128xf32>
    %114 = vector.extract_strided_slice %6 {offsets = [15, 0], sizes = [1, 128], strides = [1, 1]} : vector<25x128xf32> to vector<1x128xf32>
    %115 = vector.shape_cast %114 : vector<1x128xf32> to vector<128xf32>
    %116 = vector.shape_cast %115 : vector<128xf32> to vector<1x128xf32>
    %117 = vector.broadcast %116 : vector<1x128xf32> to vector<16x128xf32>
    %118 = arith.mulf %113, %117 : vector<16x128xf32>
    %119 = arith.addf %112, %118 : vector<16x128xf32>
    %c3_32 = arith.constant 3 : index
    %c8_33 = arith.constant 8 : index
    %120 = vector.load %arg9[%c3_32, %c8_33] : memref<20x160xf32, #tpu.memory_space<vmem>>, vector<16x128xf32>
    %121 = vector.extract_strided_slice %6 {offsets = [16, 0], sizes = [1, 128], strides = [1, 1]} : vector<25x128xf32> to vector<1x128xf32>
    %122 = vector.shape_cast %121 : vector<1x128xf32> to vector<128xf32>
    %123 = vector.shape_cast %122 : vector<128xf32> to vector<1x128xf32>
    %124 = vector.broadcast %123 : vector<1x128xf32> to vector<16x128xf32>
    %125 = arith.mulf %120, %124 : vector<16x128xf32>
    %126 = arith.addf %119, %125 : vector<16x128xf32>
    %c3_34 = arith.constant 3 : index
    %c16_35 = arith.constant 16 : index
    %127 = vector.load %arg9[%c3_34, %c16_35] : memref<20x160xf32, #tpu.memory_space<vmem>>, vector<16x128xf32>
    %128 = vector.extract_strided_slice %6 {offsets = [17, 0], sizes = [1, 128], strides = [1, 1]} : vector<25x128xf32> to vector<1x128xf32>
    %129 = vector.shape_cast %128 : vector<1x128xf32> to vector<128xf32>
    %130 = vector.shape_cast %129 : vector<128xf32> to vector<1x128xf32>
    %131 = vector.broadcast %130 : vector<1x128xf32> to vector<16x128xf32>
    %132 = arith.mulf %127, %131 : vector<16x128xf32>
    %133 = arith.addf %126, %132 : vector<16x128xf32>
    %c3_36 = arith.constant 3 : index
    %c24_37 = arith.constant 24 : index
    %134 = vector.load %arg9[%c3_36, %c24_37] : memref<20x160xf32, #tpu.memory_space<vmem>>, vector<16x128xf32>
    %135 = vector.extract_strided_slice %6 {offsets = [18, 0], sizes = [1, 128], strides = [1, 1]} : vector<25x128xf32> to vector<1x128xf32>
    %136 = vector.shape_cast %135 : vector<1x128xf32> to vector<128xf32>
    %137 = vector.shape_cast %136 : vector<128xf32> to vector<1x128xf32>
    %138 = vector.broadcast %137 : vector<1x128xf32> to vector<16x128xf32>
    %139 = arith.mulf %134, %138 : vector<16x128xf32>
    %140 = arith.addf %133, %139 : vector<16x128xf32>
    %c3_38 = arith.constant 3 : index
    %c32_39 = arith.constant 32 : index
    %141 = vector.load %arg9[%c3_38, %c32_39] : memref<20x160xf32, #tpu.memory_space<vmem>>, vector<16x128xf32>
    %142 = vector.extract_strided_slice %6 {offsets = [19, 0], sizes = [1, 128], strides = [1, 1]} : vector<25x128xf32> to vector<1x128xf32>
    %143 = vector.shape_cast %142 : vector<1x128xf32> to vector<128xf32>
    %144 = vector.shape_cast %143 : vector<128xf32> to vector<1x128xf32>
    %145 = vector.broadcast %144 : vector<1x128xf32> to vector<16x128xf32>
    %146 = arith.mulf %141, %145 : vector<16x128xf32>
    %147 = arith.addf %140, %146 : vector<16x128xf32>
    %c4 = arith.constant 4 : index
    %c0_40 = arith.constant 0 : index
    %148 = vector.load %arg9[%c4, %c0_40] : memref<20x160xf32, #tpu.memory_space<vmem>>, vector<16x128xf32>
    %149 = vector.extract_strided_slice %6 {offsets = [20, 0], sizes = [1, 128], strides = [1, 1]} : vector<25x128xf32> to vector<1x128xf32>
    %150 = vector.shape_cast %149 : vector<1x128xf32> to vector<128xf32>
    %151 = vector.shape_cast %150 : vector<128xf32> to vector<1x128xf32>
    %152 = vector.broadcast %151 : vector<1x128xf32> to vector<16x128xf32>
    %153 = arith.mulf %148, %152 : vector<16x128xf32>
    %154 = arith.addf %147, %153 : vector<16x128xf32>
    %c4_41 = arith.constant 4 : index
    %c8_42 = arith.constant 8 : index
    %155 = vector.load %arg9[%c4_41, %c8_42] : memref<20x160xf32, #tpu.memory_space<vmem>>, vector<16x128xf32>
    %156 = vector.extract_strided_slice %6 {offsets = [21, 0], sizes = [1, 128], strides = [1, 1]} : vector<25x128xf32> to vector<1x128xf32>
    %157 = vector.shape_cast %156 : vector<1x128xf32> to vector<128xf32>
    %158 = vector.shape_cast %157 : vector<128xf32> to vector<1x128xf32>
    %159 = vector.broadcast %158 : vector<1x128xf32> to vector<16x128xf32>
    %160 = arith.mulf %155, %159 : vector<16x128xf32>
    %161 = arith.addf %154, %160 : vector<16x128xf32>
    %c4_43 = arith.constant 4 : index
    %c16_44 = arith.constant 16 : index
    %162 = vector.load %arg9[%c4_43, %c16_44] : memref<20x160xf32, #tpu.memory_space<vmem>>, vector<16x128xf32>
    %163 = vector.extract_strided_slice %6 {offsets = [22, 0], sizes = [1, 128], strides = [1, 1]} : vector<25x128xf32> to vector<1x128xf32>
    %164 = vector.shape_cast %163 : vector<1x128xf32> to vector<128xf32>
    %165 = vector.shape_cast %164 : vector<128xf32> to vector<1x128xf32>
    %166 = vector.broadcast %165 : vector<1x128xf32> to vector<16x128xf32>
    %167 = arith.mulf %162, %166 : vector<16x128xf32>
    %168 = arith.addf %161, %167 : vector<16x128xf32>
    %c4_45 = arith.constant 4 : index
    %c24_46 = arith.constant 24 : index
    %169 = vector.load %arg9[%c4_45, %c24_46] : memref<20x160xf32, #tpu.memory_space<vmem>>, vector<16x128xf32>
    %170 = vector.extract_strided_slice %6 {offsets = [23, 0], sizes = [1, 128], strides = [1, 1]} : vector<25x128xf32> to vector<1x128xf32>
    %171 = vector.shape_cast %170 : vector<1x128xf32> to vector<128xf32>
    %172 = vector.shape_cast %171 : vector<128xf32> to vector<1x128xf32>
    %173 = vector.broadcast %172 : vector<1x128xf32> to vector<16x128xf32>
    %174 = arith.mulf %169, %173 : vector<16x128xf32>
    %175 = arith.addf %168, %174 : vector<16x128xf32>
    %c4_47 = arith.constant 4 : index
    %c32_48 = arith.constant 32 : index
    %176 = vector.load %arg9[%c4_47, %c32_48] : memref<20x160xf32, #tpu.memory_space<vmem>>, vector<16x128xf32>
    %177 = vector.extract_strided_slice %6 {offsets = [24, 0], sizes = [1, 128], strides = [1, 1]} : vector<25x128xf32> to vector<1x128xf32>
    %178 = vector.shape_cast %177 : vector<1x128xf32> to vector<128xf32>
    %179 = vector.shape_cast %178 : vector<128xf32> to vector<1x128xf32>
    %180 = vector.broadcast %179 : vector<1x128xf32> to vector<16x128xf32>
    %181 = arith.mulf %176, %180 : vector<16x128xf32>
    %182 = arith.addf %175, %181 : vector<16x128xf32>
    %c0_49 = arith.constant 0 : index
    %c0_50 = arith.constant 0 : index
    %183 = vector.load %arg3[%c0_49, %c0_50] : memref<1x128xf32, #tpu.memory_space<vmem>>, vector<1x128xf32>
    %184 = vector.broadcast %183 : vector<1x128xf32> to vector<16x128xf32>
    %185 = arith.addf %182, %184 : vector<16x128xf32>
    %c3_51 = arith.constant 3 : index
    %c24_52 = arith.constant 24 : index
    %186 = vector.load %arg10[%c3_51, %c24_52] : memref<22x176xf32, #tpu.memory_space<vmem>>, vector<16x128xf32>
    tpu.vector_store %arg10[%c3_51, %c24_52], %185 {strides = array<i32>} : memref<22x176xf32, #tpu.memory_space<vmem>>, vector<16x128xf32>,
    %c0_53 = arith.constant 0 : index
    %c0_54 = arith.constant 0 : index
    %187 = vector.load %arg4[%c0_53, %c0_54] : memref<9x128xf32, #tpu.memory_space<vmem>>, vector<9x128xf32>
    %cst_55 = arith.constant 0.000000e+00 : f32
    %188 = vector.broadcast %cst_55 : f32 to vector<16x128xf32>
    %c0_56 = arith.constant 0 : index
    %c0_57 = arith.constant 0 : index
    %189 = vector.load %arg10[%c0_56, %c0_57] : memref<22x176xf32, #tpu.memory_space<vmem>>, vector<16x128xf32>
    %190 = vector.extract_strided_slice %187 {offsets = [0, 0], sizes = [1, 128], strides = [1, 1]} : vector<9x128xf32> to vector<1x128xf32>
    %191 = vector.shape_cast %190 : vector<1x128xf32> to vector<128xf32>
    %192 = vector.shape_cast %191 : vector<128xf32> to vector<1x128xf32>
    %193 = vector.broadcast %192 : vector<1x128xf32> to vector<16x128xf32>
    %194 = arith.mulf %189, %193 : vector<16x128xf32>
    %195 = arith.addf %188, %194 : vector<16x128xf32>
    %c0_58 = arith.constant 0 : index
    %c24_59 = arith.constant 24 : index
    %196 = vector.load %arg10[%c0_58, %c24_59] : memref<22x176xf32, #tpu.memory_space<vmem>>, vector<16x128xf32>
    %197 = vector.extract_strided_slice %187 {offsets = [1, 0], sizes = [1, 128], strides = [1, 1]} : vector<9x128xf32> to vector<1x128xf32>
    %198 = vector.shape_cast %197 : vector<1x128xf32> to vector<128xf32>
    %199 = vector.shape_cast %198 : vector<128xf32> to vector<1x128xf32>
    %200 = vector.broadcast %199 : vector<1x128xf32> to vector<16x128xf32>
    %201 = arith.mulf %196, %200 : vector<16x128xf32>
    %202 = arith.addf %195, %201 : vector<16x128xf32>
    %c0_60 = arith.constant 0 : index
    %c48 = arith.constant 48 : index
    %203 = vector.load %arg10[%c0_60, %c48] : memref<22x176xf32, #tpu.memory_space<vmem>>, vector<16x128xf32>
    %204 = vector.extract_strided_slice %187 {offsets = [2, 0], sizes = [1, 128], strides = [1, 1]} : vector<9x128xf32> to vector<1x128xf32>
    %205 = vector.shape_cast %204 : vector<1x128xf32> to vector<128xf32>
    %206 = vector.shape_cast %205 : vector<128xf32> to vector<1x128xf32>
    %207 = vector.broadcast %206 : vector<1x128xf32> to vector<16x128xf32>
    %208 = arith.mulf %203, %207 : vector<16x128xf32>
    %209 = arith.addf %202, %208 : vector<16x128xf32>
    %c3_61 = arith.constant 3 : index
    %c0_62 = arith.constant 0 : index
    %210 = vector.load %arg10[%c3_61, %c0_62] : memref<22x176xf32, #tpu.memory_space<vmem>>, vector<16x128xf32>
    %211 = vector.extract_strided_slice %187 {offsets = [3, 0], sizes = [1, 128], strides = [1, 1]} : vector<9x128xf32> to vector<1x128xf32>
    %212 = vector.shape_cast %211 : vector<1x128xf32> to vector<128xf32>
    %213 = vector.shape_cast %212 : vector<128xf32> to vector<1x128xf32>
    %214 = vector.broadcast %213 : vector<1x128xf32> to vector<16x128xf32>
    %215 = arith.mulf %210, %214 : vector<16x128xf32>
    %216 = arith.addf %209, %215 : vector<16x128xf32>
    %c3_63 = arith.constant 3 : index
    %c24_64 = arith.constant 24 : index
    %217 = vector.load %arg10[%c3_63, %c24_64] : memref<22x176xf32, #tpu.memory_space<vmem>>, vector<16x128xf32>
    %218 = vector.extract_strided_slice %187 {offsets = [4, 0], sizes = [1, 128], strides = [1, 1]} : vector<9x128xf32> to vector<1x128xf32>
    %219 = vector.shape_cast %218 : vector<1x128xf32> to vector<128xf32>
    %220 = vector.shape_cast %219 : vector<128xf32> to vector<1x128xf32>
    %221 = vector.broadcast %220 : vector<1x128xf32> to vector<16x128xf32>
    %222 = arith.mulf %217, %221 : vector<16x128xf32>
    %223 = arith.addf %216, %222 : vector<16x128xf32>
    %c3_65 = arith.constant 3 : index
    %c48_66 = arith.constant 48 : index
    %224 = vector.load %arg10[%c3_65, %c48_66] : memref<22x176xf32, #tpu.memory_space<vmem>>, vector<16x128xf32>
    %225 = vector.extract_strided_slice %187 {offsets = [5, 0], sizes = [1, 128], strides = [1, 1]} : vector<9x128xf32> to vector<1x128xf32>
    %226 = vector.shape_cast %225 : vector<1x128xf32> to vector<128xf32>
    %227 = vector.shape_cast %226 : vector<128xf32> to vector<1x128xf32>
    %228 = vector.broadcast %227 : vector<1x128xf32> to vector<16x128xf32>
    %229 = arith.mulf %224, %228 : vector<16x128xf32>
    %230 = arith.addf %223, %229 : vector<16x128xf32>
    %c6 = arith.constant 6 : index
    %c0_67 = arith.constant 0 : index
    %231 = vector.load %arg10[%c6, %c0_67] : memref<22x176xf32, #tpu.memory_space<vmem>>, vector<16x128xf32>
    %232 = vector.extract_strided_slice %187 {offsets = [6, 0], sizes = [1, 128], strides = [1, 1]} : vector<9x128xf32> to vector<1x128xf32>
    %233 = vector.shape_cast %232 : vector<1x128xf32> to vector<128xf32>
    %234 = vector.shape_cast %233 : vector<128xf32> to vector<1x128xf32>
    %235 = vector.broadcast %234 : vector<1x128xf32> to vector<16x128xf32>
    %236 = arith.mulf %231, %235 : vector<16x128xf32>
    %237 = arith.addf %230, %236 : vector<16x128xf32>
    %c6_68 = arith.constant 6 : index
    %c24_69 = arith.constant 24 : index
    %238 = vector.load %arg10[%c6_68, %c24_69] : memref<22x176xf32, #tpu.memory_space<vmem>>, vector<16x128xf32>
    %239 = vector.extract_strided_slice %187 {offsets = [7, 0], sizes = [1, 128], strides = [1, 1]} : vector<9x128xf32> to vector<1x128xf32>
    %240 = vector.shape_cast %239 : vector<1x128xf32> to vector<128xf32>
    %241 = vector.shape_cast %240 : vector<128xf32> to vector<1x128xf32>
    %242 = vector.broadcast %241 : vector<1x128xf32> to vector<16x128xf32>
    %243 = arith.mulf %238, %242 : vector<16x128xf32>
    %244 = arith.addf %237, %243 : vector<16x128xf32>
    %c6_70 = arith.constant 6 : index
    %c48_71 = arith.constant 48 : index
    %245 = vector.load %arg10[%c6_70, %c48_71] : memref<22x176xf32, #tpu.memory_space<vmem>>, vector<16x128xf32>
    %246 = vector.extract_strided_slice %187 {offsets = [8, 0], sizes = [1, 128], strides = [1, 1]} : vector<9x128xf32> to vector<1x128xf32>
    %247 = vector.shape_cast %246 : vector<1x128xf32> to vector<128xf32>
    %248 = vector.shape_cast %247 : vector<128xf32> to vector<1x128xf32>
    %249 = vector.broadcast %248 : vector<1x128xf32> to vector<16x128xf32>
    %250 = arith.mulf %245, %249 : vector<16x128xf32>
    %251 = arith.addf %244, %250 : vector<16x128xf32>
    %c0_72 = arith.constant 0 : index
    %c0_73 = arith.constant 0 : index
    %252 = vector.load %arg5[%c0_72, %c0_73] : memref<1x128xf32, #tpu.memory_space<vmem>>, vector<1x128xf32>
    %253 = vector.broadcast %252 : vector<1x128xf32> to vector<16x128xf32>
    %254 = arith.addf %251, %253 : vector<16x128xf32>
    %c0_74 = arith.constant 0 : index
    %c0_75 = arith.constant 0 : index
    %255 = vector.load %arg6[%c0_74, %c0_75] : memref<128x256xf32, #tpu.memory_space<vmem>>, vector<128x256xf32>
    %cst_76 = arith.constant dense<0.000000e+00> : vector<16x256xf32>
    %256 = tpu.matmul %254, %255, %cst_76 {dimension_numbers = #tpu.dot_dimension_numbers<[1], [0], [0], [1], [0, 0, 1, 1], [], []>} : vector<16x128xf32>, vector<128x256xf32>, vector<16x256xf32> -> vector<16x256xf32>
    %c0_77 = arith.constant 0 : index
    %c0_78 = arith.constant 0 : index
    %257 = vector.load %arg7[%c0_77, %c0_78] : memref<1x256xf32, #tpu.memory_space<vmem>>, vector<1x256xf32>
    %258 = vector.broadcast %257 : vector<1x256xf32> to vector<16x256xf32>
    %259 = arith.addf %256, %258 : vector<16x256xf32>
    %260 = vector.extract_strided_slice %259 {offsets = [0, 0], sizes = [16, 128], strides = [1, 1]} : vector<16x256xf32> to vector<16x128xf32>
    %261 = vector.extract_strided_slice %259 {offsets = [0, 128], sizes = [16, 128], strides = [1, 1]} : vector<16x256xf32> to vector<16x128xf32>
    %262 = arith.negf %261 : vector<16x128xf32>
    %263 = math.exp %262 : vector<16x128xf32>
    %cst_79 = arith.constant 1.000000e+00 : f32
    %264 = vector.broadcast %cst_79 : f32 to vector<16x128xf32>
    %265 = arith.addf %264, %263 : vector<16x128xf32>
    %266 = arith.divf %264, %265 : vector<16x128xf32>
    %267 = arith.mulf %266, %260 : vector<16x128xf32>
    %c0_80 = arith.constant 0 : index
    %c0_81 = arith.constant 0 : index
    %c0_82 = arith.constant 0 : index
    %268 = vector.load %arg8[%c0_80, %c0_81, %c0_82] : memref<1x16x128xf32, #tpu.memory_space<vmem>>, vector<1x16x128xf32>
    %269 = vector.shape_cast %268 : vector<1x16x128xf32> to vector<16x128xf32>
    %270 = vector.shape_cast %267 : vector<16x128xf32> to vector<1x16x128xf32>
    tpu.vector_store %arg8[%c0_80, %c0_81, %c0_82], %270 {strides = array<i32>} : memref<1x16x128xf32, #tpu.memory_space<vmem>>, vector<1x16x128xf32>,
    return
  }
  func.func @transform_0(%arg0: i32) -> (i32, i32, i32) {
    %c0_i32 = arith.constant 0 : i32
    %c0_i32_0 = arith.constant 0 : i32
    %c0_i32_1 = arith.constant 0 : i32
    return %arg0, %c0_i32, %c0_i32_0 : i32, i32, i32
  }
  func.func @transform_1(%arg0: i32) -> (i32, i32) {
    %c0_i32 = arith.constant 0 : i32
    %c0_i32_0 = arith.constant 0 : i32
    %c0_i32_1 = arith.constant 0 : i32
    return %c0_i32, %c0_i32_0 : i32, i32
  }
  func.func @transform_2(%arg0: i32) -> (i32, i32) {
    %c0_i32 = arith.constant 0 : i32
    %c0_i32_0 = arith.constant 0 : i32
    %c0_i32_1 = arith.constant 0 : i32
    return %c0_i32, %c0_i32_0 : i32, i32
  }
  func.func @transform_3(%arg0: i32) -> (i32, i32) {
    %c0_i32 = arith.constant 0 : i32
    %c0_i32_0 = arith.constant 0 : i32
    %c0_i32_1 = arith.constant 0 : i32
    return %c0_i32, %c0_i32_0 : i32, i32
  }
  func.func @transform_4(%arg0: i32) -> (i32, i32) {
    %c0_i32 = arith.constant 0 : i32
    %c0_i32_0 = arith.constant 0 : i32
    %c0_i32_1 = arith.constant 0 : i32
    return %c0_i32, %c0_i32_0 : i32, i32
  }
  func.func @transform_5(%arg0: i32) -> (i32, i32) {
    %c0_i32 = arith.constant 0 : i32
    %c0_i32_0 = arith.constant 0 : i32
    %c0_i32_1 = arith.constant 0 : i32
    return %c0_i32, %c0_i32_0 : i32, i32
  }
  func.func @transform_6(%arg0: i32) -> (i32, i32) {
    %c0_i32 = arith.constant 0 : i32
    %c0_i32_0 = arith.constant 0 : i32
    %c0_i32_1 = arith.constant 0 : i32
    return %c0_i32, %c0_i32_0 : i32, i32
  }
  func.func @transform_7(%arg0: i32) -> (i32, i32, i32) {
    %c0_i32 = arith.constant 0 : i32
    %c0_i32_0 = arith.constant 0 : i32
    %c0_i32_1 = arith.constant 0 : i32
    return %arg0, %c0_i32, %c0_i32_0 : i32, i32, i32
  }
}

</mosaic_0001>

<llo_original>
// kernel: apply.1
$region0: #{apply.1}
  #allocation0 [shape = 'u32[]', space=smem, size = 0x4, offset = 0x4, fixed_abs, tag = 'smem constant byte address 0x4 - core index']
  #allocation1 [shape = 'u32[72,128]{1,0:T(1,128)}', space=vmem, size = 0x9000, scoped, tag = 'internal scratch']
  #allocation2 [shape = 'f32[20,160]{1,0:T(8,128)}', space=vmem, size = 0x6000, scoped, tag = 'scratch operand']
  #allocation3 [shape = 'f32[22,176]{1,0:T(8,128)}', space=vmem, size = 0x6000, scoped, tag = 'scratch operand']
  %s0 = inlined_call_operand.vmem [shape: f32[1,16,128], index: 0, kind: input, shape index: {}]
  %s1 = inlined_call_operand.vmem [shape: f32[25,128], index: 1, kind: input, shape index: {}]
  %s2 = inlined_call_operand.vmem [shape: f32[1,128], index: 2, kind: input, shape index: {}]
  %s3 = inlined_call_operand.vmem [shape: f32[9,128], index: 3, kind: input, shape index: {}]
  %s4 = inlined_call_operand.vmem [shape: f32[1,128], index: 4, kind: input, shape index: {}]
  %s5 = inlined_call_operand.vmem [shape: f32[128,256], index: 5, kind: input, shape index: {}]
  %s6 = inlined_call_operand.vmem [shape: f32[1,256], index: 6, kind: input, shape index: {}]
  %s7 = inlined_call_operand.vmem [shape: f32[1,16,128], index: 7, kind: output, shape index: {}]
  %s8 = sld [smem:[#allocation0]]
  $region42: #{apply.1} parent=0
    _
  %s10 = ssub.s32 1, %s8
  %s11 = scalar_select 0, %s10, %s8
  // Predicated region
  $region2: #{apply.1} parent=0 // pred_check
    _
  $region3: #{apply.1} parent=0 // pred_check_branch
    %13 = sbr.rel (0) target = $region5
  $region4: #{apply.1} parent=0 // pred_region
    _
  $region5: #{apply.1} parent=0 // pred_fallthru
    _
  // Predicated region
  $region6: #{apply.1} parent=0 // pred_check
    _
  $region7: #{apply.1} parent=0 // pred_check_branch
    %15 = sbr.rel (0) target = $region9
  $region8: #{apply.1} parent=0 // pred_region
    _
  $region9: #{apply.1} parent=0 // pred_fallthru
    _
  // Predicated region
  $region10: #{apply.1} parent=0 // pred_check
    _
  $region11: #{apply.1} parent=0 // pred_check_branch
    %17 = sbr.rel (0) target = $region13
  $region12: #{apply.1} parent=0 // pred_region
    _
  $region13: #{apply.1} parent=0 // pred_fallthru
    _
  // Predicated region
  $region14: #{apply.1} parent=0 // pred_check
    _
  $region15: #{apply.1} parent=0 // pred_check_branch
    %19 = sbr.rel (0) target = $region17
  $region16: #{apply.1} parent=0 // pred_region
    _
  $region17: #{apply.1} parent=0 // pred_fallthru
    _
  // Predicated region
  $region18: #{apply.1} parent=0 // pred_check
    _
  $region19: #{apply.1} parent=0 // pred_check_branch
    %21 = sbr.rel (0) target = $region21
  $region20: #{apply.1} parent=0 // pred_region
    _
  $region21: #{apply.1} parent=0 // pred_fallthru
    _
  // Predicated region
  $region22: #{apply.1} parent=0 // pred_check
    _
  $region23: #{apply.1} parent=0 // pred_check_branch
    %23 = sbr.rel (0) target = $region25
  $region24: #{apply.1} parent=0 // pred_region
    _
  $region25: #{apply.1} parent=0 // pred_fallthru
    _
  // Predicated region
  $region26: #{apply.1} parent=0 // pred_check
    _
  $region27: #{apply.1} parent=0 // pred_check_branch
    %25 = sbr.rel (0) target = $region29
  $region28: #{apply.1} parent=0 // pred_region
    _
  $region29: #{apply.1} parent=0 // pred_fallthru
    _
  %p26 = scmp.eq.s32.totalorder 0, 0
  // Predicated region
  $region30: #{apply.1} parent=0 // pred_check
    %p27 = pneg %p26
  $region31: #{apply.1} parent=0 // pred_check_branch
    %29 = sbr.rel (%p27) target = $region33
  $region32: #{apply.1} parent=0 // pred_region
    %30 = vst [vmem:[#allocation2] sm:$0xff] 0.0
    %vm31 = vcmask 261120
    %32 = vst.msk [vmem:[#allocation2 + $0x8] sm:$0xff] %vm31, 0.0
    %33 = vst [vmem:[#allocation2 + $0x10] sm:$0xff] 0.0
    %34 = vst.msk [vmem:[#allocation2 + $0x18] sm:$0xff] %vm31, 0.0
    %35 = vst [vmem:[#allocation2 + $0x20] sm:$0xf] 0.0
    %vm36 = vcmask 257024
    %37 = vst.msk [vmem:[#allocation2 + $0x28] sm:$0xf] %vm36, 0.0
    %38 = vst [vmem:[#allocation3] sm:$0xff] 0.0
    %vm39 = vcmask 392192
    %40 = vst.msk [vmem:[#allocation3 + $0x8] sm:$0xff] %vm39, 0.0
    %41 = vst [vmem:[#allocation3 + $0x10] sm:$0xff] 0.0
    %42 = vst.msk [vmem:[#allocation3 + $0x18] sm:$0xff] %vm39, 0.0
    %43 = vst [vmem:[#allocation3 + $0x20] sm:$0x3f] 0.0
    %vm44 = vcmask 390144
    %45 = vst.msk [vmem:[#allocation3 + $0x28] sm:$0x3f] %vm44, 0.0
  $region33: #{apply.1} parent=0 // pred_fallthru
    _
  %v46 = vld [vmem:[%s0] sm:$0xff]
  %v47 = vld [vmem:[%s0 + $0x8] sm:$0xff]
  %vm50 = vcmask 1041408
  %v51 = vrot.slane %v46, 6
  %v52 = vrot.slane %v47, 6
  %v53 = vsel %vm50, %v51, %v52
  %54 = vrot.lane.b32.xlu0 %v51, 16
  %v55 = vpop.permute.xlu0 %54
  %56 = vrot.lane.b32.xlu0 %v53, 16
  %v57 = vpop.permute.xlu0 %56
  %58 = vrot.lane.b32.xlu0 %v52, 16
  %v59 = vpop.permute.xlu0 %58
  %vm63 = vcmask 1047682
  %64 = vst.msk [vmem:[#allocation2] sm:$0xfc] %vm63, %v55
  %vm65 = vcmask 130050
  %66 = vst.msk [vmem:[#allocation2 + $0x8] sm:$0xfc] %vm65, %v55
  %vm67 = vcmask 1047680
  %68 = vst.msk [vmem:[#allocation2 + $0x10] sm:$0xff] %vm67, %v57
  %vm69 = vcmask 130048
  %70 = vst.msk [vmem:[#allocation2 + $0x18] sm:$0xff] %vm69, %v57
  %vm71 = vcmask 1041536
  %72 = vst.msk [vmem:[#allocation2 + $0x20] sm:$0x3] %vm71, %v59
  %vm73 = vcmask 123904
  %74 = vst.msk [vmem:[#allocation2 + $0x28] sm:$0x3] %vm73, %v59
  %v75 = vld [vmem:[%s1] sm:$0xff]
  %v76 = vld [vmem:[%s1 + $0x8] sm:$0xff]
  %v77 = vld [vmem:[%s1 + $0x10] sm:$0xff]
  %v78 = vld [vmem:[%s1 + $0x18] sm:$0x1]
  %v79 = vld [vmem:[#allocation2] sm:$0xff]
  %v80 = vld [vmem:[#allocation2 + $0x10] sm:$0xff]
  %v81 = vperm.slane %v75, 0
  %v82 = vmul.f32 %v79, %v81
  %v83 = vmul.f32 %v80, %v81
  %v84 = vadd.f32 %v82, 0.0
  %v85 = vadd.f32 %v83, 0.0
  %v86 = vld [vmem:[#allocation2 + $0x8] sm:$0xff]
  %v87 = vld [vmem:[#allocation2 + $0x18] sm:$0xff]
  %v88 = vperm.slane %v75, 1
  %90 = vrot.lane.b32.xlu0 %v88, 8
  %v91 = vpop.permute.xlu0 %90
  %v93 = vmul.f32 %v79, %v91
  %v94 = vmul.f32 %v86, %v91
  %v95 = vmul.f32 %v80, %v91
  %v96 = vmul.f32 %v87, %v91
  %101 = vrot.lane.b32.xlu0 %v93, 120
  %v102 = vpop.permute.xlu0 %101
  %103 = vrot.lane.b32.xlu0 %v94, 120
  %v104 = vpop.permute.xlu0 %103
  %105 = vrot.lane.b32.xlu0 %v95, 120
  %v106 = vpop.permute.xlu0 %105
  %107 = vrot.lane.b32.xlu0 %v96, 120
  %v108 = vpop.permute.xlu0 %107
  %vm109 = vcmask 982016
  %v110 = vsel %vm109, %v102, %v104
  %v111 = vsel %vm109, %v106, %v108
  %v114 = vadd.f32 %v84, %v110
  %v115 = vadd.f32 %v85, %v111
  %v116 = vperm.slane %v75, 2
  %118 = vrot.lane.b32.xlu0 %v116, 16
  %v119 = vpop.permute.xlu0 %118
  %v121 = vmul.f32 %v79, %v119
  %v122 = vmul.f32 %v86, %v119
  %v123 = vmul.f32 %v80, %v119
  %v124 = vmul.f32 %v87, %v119
  %129 = vrot.lane.b32.xlu0 %v121, 112
  %v130 = vpop.permute.xlu0 %129
  %131 = vrot.lane.b32.xlu0 %v122, 112
  %v132 = vpop.permute.xlu0 %131
  %133 = vrot.lane.b32.xlu0 %v123, 112
  %v134 = vpop.permute.xlu0 %133
  %135 = vrot.lane.b32.xlu0 %v124, 112
  %v136 = vpop.permute.xlu0 %135
  %vm137 = vcmask 916480
  %v138 = vsel %vm137, %v130, %v132
  %v139 = vsel %vm137, %v134, %v136
  %v142 = vadd.f32 %v114, %v138
  %v143 = vadd.f32 %v115, %v139
  %v144 = vperm.slane %v75, 3
  %146 = vrot.lane.b32.xlu0 %v144, 24
  %v147 = vpop.permute.xlu0 %146
  %v149 = vmul.f32 %v79, %v147
  %v150 = vmul.f32 %v86, %v147
  %v151 = vmul.f32 %v80, %v147
  %v152 = vmul.f32 %v87, %v147
  %157 = vrot.lane.b32.xlu0 %v149, 104
  %v158 = vpop.permute.xlu0 %157
  %159 = vrot.lane.b32.xlu0 %v150, 104
  %v160 = vpop.permute.xlu0 %159
  %161 = vrot.lane.b32.xlu0 %v151, 104
  %v162 = vpop.permute.xlu0 %161
  %163 = vrot.lane.b32.xlu0 %v152, 104
  %v164 = vpop.permute.xlu0 %163
  %vm165 = vcmask 850944
  %v166 = vsel %vm165, %v158, %v160
  %v167 = vsel %vm165, %v162, %v164
  %v170 = vadd.f32 %v142, %v166
  %v171 = vadd.f32 %v143, %v167
  %v172 = vperm.slane %v75, 4
  %174 = vrot.lane.b32.xlu0 %v172, 32
  %v175 = vpop.permute.xlu0 %174
  %v177 = vmul.f32 %v79, %v175
  %v178 = vmul.f32 %v86, %v175
  %v179 = vmul.f32 %v80, %v175
  %v180 = vmul.f32 %v87, %v175
  %185 = vrot.lane.b32.xlu0 %v177, 96
  %v186 = vpop.permute.xlu0 %185
  %187 = vrot.lane.b32.xlu0 %v178, 96
  %v188 = vpop.permute.xlu0 %187
  %189 = vrot.lane.b32.xlu0 %v179, 96
  %v190 = vpop.permute.xlu0 %189
  %191 = vrot.lane.b32.xlu0 %v180, 96
  %v192 = vpop.permute.xlu0 %191
  %vm193 = vcmask 785408
  %v194 = vsel %vm193, %v186, %v188
  %v195 = vsel %vm193, %v190, %v192
  %v198 = vadd.f32 %v170, %v194
  %v199 = vadd.f32 %v171, %v195
  %v200 = vld [vmem:[#allocation2] sm:$0xfe]
  %v201 = vld [vmem:[#allocation2 + $0x20] sm:$0x1]
  %v202 = vperm.slane %v75, 5
  %v203 = vmul.f32 %v200, %v202
  %v204 = vmul.f32 %v80, %v202
  %v205 = vmul.f32 %v201, %v202
  %vm209 = vcmask 1046528
  %v210 = vrot.slane %v203, 1
  %v211 = vrot.slane %v204, 1
  %v212 = vsel %vm209, %v210, %v211
  %v213 = vrot.slane %v205, 1
  %v214 = vsel %vm209, %v211, %v213
  %v217 = vadd.f32 %v198, %v212
  %v218 = vadd.f32 %v199, %v214
  %v219 = vld [vmem:[#allocation2 + $0x8] sm:$0xfe]
  %v220 = vld [vmem:[#allocation2 + $0x28] sm:$0x1]
  %v221 = vperm.slane %v75, 6
  %223 = vrot.lane.b32.xlu0 %v221, 8
  %v224 = vpop.permute.xlu0 %223
  %v226 = vmul.f32 %v200, %v224
  %v227 = vmul.f32 %v219, %v224
  %v228 = vmul.f32 %v80, %v224
  %v229 = vmul.f32 %v87, %v224
  %v230 = vmul.f32 %v201, %v224
  %v231 = vmul.f32 %v220, %v224
  %v238 = vrot.slane %v226, 1
  %v239 = vrot.slane %v228, 1
  %v240 = vsel %vm209, %v238, %v239
  %v241 = vrot.slane %v227, 1
  %v242 = vrot.slane %v229, 1
  %v243 = vsel %vm209, %v241, %v242
  %v244 = vrot.slane %v230, 1
  %v245 = vsel %vm209, %v239, %v244
  %v246 = vrot.slane %v231, 1
  %v247 = vsel %vm209, %v242, %v246
  %248 = vrot.lane.b32.xlu0 %v240, 120
  %v249 = vpop.permute.xlu0 %248
  %250 = vrot.lane.b32.xlu0 %v243, 120
  %v251 = vpop.permute.xlu0 %250
  %252 = vrot.lane.b32.xlu0 %v245, 120
  %v253 = vpop.permute.xlu0 %252
  %254 = vrot.lane.b32.xlu0 %v247, 120
  %v255 = vpop.permute.xlu0 %254
  %v256 = vsel %vm109, %v249, %v251
  %v257 = vsel %vm109, %v253, %v255
  %v260 = vadd.f32 %v217, %v256
  %v261 = vadd.f32 %v218, %v257
  %v262 = vperm.slane %v75, 7
  %264 = vrot.lane.b32.xlu0 %v262, 16
  %v265 = vpop.permute.xlu0 %264
  %v267 = vmul.f32 %v200, %v265
  %v268 = vmul.f32 %v219, %v265
  %v269 = vmul.f32 %v80, %v265
  %v270 = vmul.f32 %v87, %v265
  %v271 = vmul.f32 %v201, %v265
  %v272 = vmul.f32 %v220, %v265
  %v279 = vrot.slane %v267, 1
  %v280 = vrot.slane %v269, 1
  %v281 = vsel %vm209, %v279, %v280
  %v282 = vrot.slane %v268, 1
  %v283 = vrot.slane %v270, 1
  %v284 = vsel %vm209, %v282, %v283
  %v285 = vrot.slane %v271, 1
  %v286 = vsel %vm209, %v280, %v285
  %v287 = vrot.slane %v272, 1
  %v288 = vsel %vm209, %v283, %v287
  %289 = vrot.lane.b32.xlu0 %v281, 112
  %v290 = vpop.permute.xlu0 %289
  %291 = vrot.lane.b32.xlu0 %v284, 112
  %v292 = vpop.permute.xlu0 %291
  %293 = vrot.lane.b32.xlu0 %v286, 112
  %v294 = vpop.permute.xlu0 %293
  %295 = vrot.lane.b32.xlu0 %v288, 112
  %v296 = vpop.permute.xlu0 %295
  %v297 = vsel %vm137, %v290, %v292
  %v298 = vsel %vm137, %v294, %v296
  %v301 = vadd.f32 %v260, %v297
  %v302 = vadd.f32 %v261, %v298
  %v303 = vperm.slane %v76, 0
  %305 = vrot.lane.b32.xlu0 %v303, 24
  %v306 = vpop.permute.xlu0 %305
  %v308 = vmul.f32 %v200, %v306
  %v309 = vmul.f32 %v219, %v306
  %v310 = vmul.f32 %v80, %v306
  %v311 = vmul.f32 %v87, %v306
  %v312 = vmul.f32 %v201, %v306
  %v313 = vmul.f32 %v220, %v306
  %v320 = vrot.slane %v308, 1
  %v321 = vrot.slane %v310, 1
  %v322 = vsel %vm209, %v320, %v321
  %v323 = vrot.slane %v309, 1
  %v324 = vrot.slane %v311, 1
  %v325 = vsel %vm209, %v323, %v324
  %v326 = vrot.slane %v312, 1
  %v327 = vsel %vm209, %v321, %v326
  %v328 = vrot.slane %v313, 1
  %v329 = vsel %vm209, %v324, %v328
  %330 = vrot.lane.b32.xlu0 %v322, 104
  %v331 = vpop.permute.xlu0 %330
  %332 = vrot.lane.b32.xlu0 %v325, 104
  %v333 = vpop.permute.xlu0 %332
  %334 = vrot.lane.b32.xlu0 %v327, 104
  %v335 = vpop.permute.xlu0 %334
  %336 = vrot.lane.b32.xlu0 %v329, 104
  %v337 = vpop.permute.xlu0 %336
  %v338 = vsel %vm165, %v331, %v333
  %v339 = vsel %vm165, %v335, %v337
  %v342 = vadd.f32 %v301, %v338
  %v343 = vadd.f32 %v302, %v339
  %v344 = vperm.slane %v76, 1
  %346 = vrot.lane.b32.xlu0 %v344, 32
  %v347 = vpop.permute.xlu0 %346
  %v349 = vmul.f32 %v200, %v347
  %v350 = vmul.f32 %v219, %v347
  %v351 = vmul.f32 %v80, %v347
  %v352 = vmul.f32 %v87, %v347
  %v353 = vmul.f32 %v201, %v347
  %v354 = vmul.f32 %v220, %v347
  %v361 = vrot.slane %v349, 1
  %v362 = vrot.slane %v351, 1
  %v363 = vsel %vm209, %v361, %v362
  %v364 = vrot.slane %v350, 1
  %v365 = vrot.slane %v352, 1
  %v366 = vsel %vm209, %v364, %v365
  %v367 = vrot.slane %v353, 1
  %v368 = vsel %vm209, %v362, %v367
  %v369 = vrot.slane %v354, 1
  %v370 = vsel %vm209, %v365, %v369
  %371 = vrot.lane.b32.xlu0 %v363, 96
  %v372 = vpop.permute.xlu0 %371
  %373 = vrot.lane.b32.xlu0 %v366, 96
  %v374 = vpop.permute.xlu0 %373
  %375 = vrot.lane.b32.xlu0 %v368, 96
  %v376 = vpop.permute.xlu0 %375
  %377 = vrot.lane.b32.xlu0 %v370, 96
  %v378 = vpop.permute.xlu0 %377
  %v379 = vsel %vm193, %v372, %v374
  %v380 = vsel %vm193, %v376, %v378
  %v383 = vadd.f32 %v342, %v379
  %v384 = vadd.f32 %v343, %v380
  %v385 = vld [vmem:[#allocation2] sm:$0xfc]
  %v386 = vld [vmem:[#allocation2 + $0x20] sm:$0x3]
  %v387 = vperm.slane %v76, 2
  %v388 = vmul.f32 %v385, %v387
  %v389 = vmul.f32 %v80, %v387
  %v390 = vmul.f32 %v386, %v387
  %vm394 = vcmask 1045504
  %v395 = vrot.slane %v388, 2
  %v396 = vrot.slane %v389, 2
  %v397 = vsel %vm394, %v395, %v396
  %v398 = vrot.slane %v390, 2
  %v399 = vsel %vm394, %v396, %v398
  %v402 = vadd.f32 %v383, %v397
  %v403 = vadd.f32 %v384, %v399
  %v404 = vld [vmem:[#allocation2 + $0x8] sm:$0xfc]
  %v405 = vld [vmem:[#allocation2 + $0x28] sm:$0x3]
  %v406 = vperm.slane %v76, 3
  %408 = vrot.lane.b32.xlu0 %v406, 8
  %v409 = vpop.permute.xlu0 %408
  %v411 = vmul.f32 %v385, %v409
  %v412 = vmul.f32 %v404, %v409
  %v413 = vmul.f32 %v80, %v409
  %v414 = vmul.f32 %v87, %v409
  %v415 = vmul.f32 %v386, %v409
  %v416 = vmul.f32 %v405, %v409
  %v423 = vrot.slane %v411, 2
  %v424 = vrot.slane %v413, 2
  %v425 = vsel %vm394, %v423, %v424
  %v426 = vrot.slane %v412, 2
  %v427 = vrot.slane %v414, 2
  %v428 = vsel %vm394, %v426, %v427
  %v429 = vrot.slane %v415, 2
  %v430 = vsel %vm394, %v424, %v429
  %v431 = vrot.slane %v416, 2
  %v432 = vsel %vm394, %v427, %v431
  %433 = vrot.lane.b32.xlu0 %v425, 120
  %v434 = vpop.permute.xlu0 %433
  %435 = vrot.lane.b32.xlu0 %v428, 120
  %v436 = vpop.permute.xlu0 %435
  %437 = vrot.lane.b32.xlu0 %v430, 120
  %v438 = vpop.permute.xlu0 %437
  %439 = vrot.lane.b32.xlu0 %v432, 120
  %v440 = vpop.permute.xlu0 %439
  %v441 = vsel %vm109, %v434, %v436
  %v442 = vsel %vm109, %v438, %v440
  %v445 = vadd.f32 %v402, %v441
  %v446 = vadd.f32 %v403, %v442
  %v447 = vperm.slane %v76, 4
  %449 = vrot.lane.b32.xlu0 %v447, 16
  %v450 = vpop.permute.xlu0 %449
  %v452 = vmul.f32 %v385, %v450
  %v453 = vmul.f32 %v404, %v450
  %v454 = vmul.f32 %v80, %v450
  %v455 = vmul.f32 %v87, %v450
  %v456 = vmul.f32 %v386, %v450
  %v457 = vmul.f32 %v405, %v450
  %v464 = vrot.slane %v452, 2
  %v465 = vrot.slane %v454, 2
  %v466 = vsel %vm394, %v464, %v465
  %v467 = vrot.slane %v453, 2
  %v468 = vrot.slane %v455, 2
  %v469 = vsel %vm394, %v467, %v468
  %v470 = vrot.slane %v456, 2
  %v471 = vsel %vm394, %v465, %v470
  %v472 = vrot.slane %v457, 2
  %v473 = vsel %vm394, %v468, %v472
  %474 = vrot.lane.b32.xlu0 %v466, 112
  %v475 = vpop.permute.xlu0 %474
  %476 = vrot.lane.b32.xlu0 %v469, 112
  %v477 = vpop.permute.xlu0 %476
  %478 = vrot.lane.b32.xlu0 %v471, 112
  %v479 = vpop.permute.xlu0 %478
  %480 = vrot.lane.b32.xlu0 %v473, 112
  %v481 = vpop.permute.xlu0 %480
  %v482 = vsel %vm137, %v475, %v477
  %v483 = vsel %vm137, %v479, %v481
  %v486 = vadd.f32 %v445, %v482
  %v487 = vadd.f32 %v446, %v483
  %v488 = vperm.slane %v76, 5
  %490 = vrot.lane.b32.xlu0 %v488, 24
  %v491 = vpop.permute.xlu0 %490
  %v493 = vmul.f32 %v385, %v491
  %v494 = vmul.f32 %v404, %v491
  %v495 = vmul.f32 %v80, %v491
  %v496 = vmul.f32 %v87, %v491
  %v497 = vmul.f32 %v386, %v491
  %v498 = vmul.f32 %v405, %v491
  %v505 = vrot.slane %v493, 2
  %v506 = vrot.slane %v495, 2
  %v507 = vsel %vm394, %v505, %v506
  %v508 = vrot.slane %v494, 2
  %v509 = vrot.slane %v496, 2
  %v510 = vsel %vm394, %v508, %v509
  %v511 = vrot.slane %v497, 2
  %v512 = vsel %vm394, %v506, %v511
  %v513 = vrot.slane %v498, 2
  %v514 = vsel %vm394, %v509, %v513
  %515 = vrot.lane.b32.xlu0 %v507, 104
  %v516 = vpop.permute.xlu0 %515
  %517 = vrot.lane.b32.xlu0 %v510, 104
  %v518 = vpop.permute.xlu0 %517
  %519 = vrot.lane.b32.xlu0 %v512, 104
  %v520 = vpop.permute.xlu0 %519
  %521 = vrot.lane.b32.xlu0 %v514, 104
  %v522 = vpop.permute.xlu0 %521
  %v523 = vsel %vm165, %v516, %v518
  %v524 = vsel %vm165, %v520, %v522
  %v527 = vadd.f32 %v486, %v523
  %v528 = vadd.f32 %v487, %v524
  %v529 = vperm.slane %v76, 6
  %531 = vrot.lane.b32.xlu0 %v529, 32
  %v532 = vpop.permute.xlu0 %531
  %v534 = vmul.f32 %v385, %v532
  %v535 = vmul.f32 %v404, %v532
  %v536 = vmul.f32 %v80, %v532
  %v537 = vmul.f32 %v87, %v532
  %v538 = vmul.f32 %v386, %v532
  %v539 = vmul.f32 %v405, %v532
  %v546 = vrot.slane %v534, 2
  %v547 = vrot.slane %v536, 2
  %v548 = vsel %vm394, %v546, %v547
  %v549 = vrot.slane %v535, 2
  %v550 = vrot.slane %v537, 2
  %v551 = vsel %vm394, %v549, %v550
  %v552 = vrot.slane %v538, 2
  %v553 = vsel %vm394, %v547, %v552
  %v554 = vrot.slane %v539, 2
  %v555 = vsel %vm394, %v550, %v554
  %556 = vrot.lane.b32.xlu0 %v548, 96
  %v557 = vpop.permute.xlu0 %556
  %558 = vrot.lane.b32.xlu0 %v551, 96
  %v559 = vpop.permute.xlu0 %558
  %560 = vrot.lane.b32.xlu0 %v553, 96
  %v561 = vpop.permute.xlu0 %560
  %562 = vrot.lane.b32.xlu0 %v555, 96
  %v563 = vpop.permute.xlu0 %562
  %v564 = vsel %vm193, %v557, %v559
  %v565 = vsel %vm193, %v561, %v563
  %v568 = vadd.f32 %v527, %v564
  %v569 = vadd.f32 %v528, %v565
  %v570 = vld [vmem:[#allocation2] sm:$0xf8]
  %v571 = vld [vmem:[#allocation2 + $0x20] sm:$0x7]
  %v572 = vperm.slane %v76, 7
  %v573 = vmul.f32 %v570, %v572
  %v574 = vmul.f32 %v80, %v572
  %v575 = vmul.f32 %v571, %v572
  %vm579 = vcmask 1044480
  %v580 = vrot.slane %v573, 3
  %v581 = vrot.slane %v574, 3
  %v582 = vsel %vm579, %v580, %v581
  %v583 = vrot.slane %v575, 3
  %v584 = vsel %vm579, %v581, %v583
  %v587 = vadd.f32 %v568, %v582
  %v588 = vadd.f32 %v569, %v584
  %v589 = vld [vmem:[#allocation2 + $0x8] sm:$0xf8]
  %v590 = vld [vmem:[#allocation2 + $0x28] sm:$0x7]
  %v591 = vperm.slane %v77, 0
  %593 = vrot.lane.b32.xlu0 %v591, 8
  %v594 = vpop.permute.xlu0 %593
  %v596 = vmul.f32 %v570, %v594
  %v597 = vmul.f32 %v589, %v594
  %v598 = vmul.f32 %v80, %v594
  %v599 = vmul.f32 %v87, %v594
  %v600 = vmul.f32 %v571, %v594
  %v601 = vmul.f32 %v590, %v594
  %v608 = vrot.slane %v596, 3
  %v609 = vrot.slane %v598, 3
  %v610 = vsel %vm579, %v608, %v609
  %v611 = vrot.slane %v597, 3
  %v612 = vrot.slane %v599, 3
  %v613 = vsel %vm579, %v611, %v612
  %v614 = vrot.slane %v600, 3
  %v615 = vsel %vm579, %v609, %v614
  %v616 = vrot.slane %v601, 3
  %v617 = vsel %vm579, %v612, %v616
  %618 = vrot.lane.b32.xlu0 %v610, 120
  %v619 = vpop.permute.xlu0 %618
  %620 = vrot.lane.b32.xlu0 %v613, 120
  %v621 = vpop.permute.xlu0 %620
  %622 = vrot.lane.b32.xlu0 %v615, 120
  %v623 = vpop.permute.xlu0 %622
  %624 = vrot.lane.b32.xlu0 %v617, 120
  %v625 = vpop.permute.xlu0 %624
  %v626 = vsel %vm109, %v619, %v621
  %v627 = vsel %vm109, %v623, %v625
  %v630 = vadd.f32 %v587, %v626
  %v631 = vadd.f32 %v588, %v627
  %v632 = vperm.slane %v77, 1
  %634 = vrot.lane.b32.xlu0 %v632, 16
  %v635 = vpop.permute.xlu0 %634
  %v637 = vmul.f32 %v570, %v635
  %v638 = vmul.f32 %v589, %v635
  %v639 = vmul.f32 %v80, %v635
  %v640 = vmul.f32 %v87, %v635
  %v641 = vmul.f32 %v571, %v635
  %v642 = vmul.f32 %v590, %v635
  %v649 = vrot.slane %v637, 3
  %v650 = vrot.slane %v639, 3
  %v651 = vsel %vm579, %v649, %v650
  %v652 = vrot.slane %v638, 3
  %v653 = vrot.slane %v640, 3
  %v654 = vsel %vm579, %v652, %v653
  %v655 = vrot.slane %v641, 3
  %v656 = vsel %vm579, %v650, %v655
  %v657 = vrot.slane %v642, 3
  %v658 = vsel %vm579, %v653, %v657
  %659 = vrot.lane.b32.xlu0 %v651, 112
  %v660 = vpop.permute.xlu0 %659
  %661 = vrot.lane.b32.xlu0 %v654, 112
  %v662 = vpop.permute.xlu0 %661
  %663 = vrot.lane.b32.xlu0 %v656, 112
  %v664 = vpop.permute.xlu0 %663
  %665 = vrot.lane.b32.xlu0 %v658, 112
  %v666 = vpop.permute.xlu0 %665
  %v667 = vsel %vm137, %v660, %v662
  %v668 = vsel %vm137, %v664, %v666
  %v671 = vadd.f32 %v630, %v667
  %v672 = vadd.f32 %v631, %v668
  %v673 = vperm.slane %v77, 2
  %675 = vrot.lane.b32.xlu0 %v673, 24
  %v676 = vpop.permute.xlu0 %675
  %v678 = vmul.f32 %v570, %v676
  %v679 = vmul.f32 %v589, %v676
  %v680 = vmul.f32 %v80, %v676
  %v681 = vmul.f32 %v87, %v676
  %v682 = vmul.f32 %v571, %v676
  %v683 = vmul.f32 %v590, %v676
  %v690 = vrot.slane %v678, 3
  %v691 = vrot.slane %v680, 3
  %v692 = vsel %vm579, %v690, %v691
  %v693 = vrot.slane %v679, 3
  %v694 = vrot.slane %v681, 3
  %v695 = vsel %vm579, %v693, %v694
  %v696 = vrot.slane %v682, 3
  %v697 = vsel %vm579, %v691, %v696
  %v698 = vrot.slane %v683, 3
  %v699 = vsel %vm579, %v694, %v698
  %700 = vrot.lane.b32.xlu0 %v692, 104
  %v701 = vpop.permute.xlu0 %700
  %702 = vrot.lane.b32.xlu0 %v695, 104
  %v703 = vpop.permute.xlu0 %702
  %704 = vrot.lane.b32.xlu0 %v697, 104
  %v705 = vpop.permute.xlu0 %704
  %706 = vrot.lane.b32.xlu0 %v699, 104
  %v707 = vpop.permute.xlu0 %706
  %v708 = vsel %vm165, %v701, %v703
  %v709 = vsel %vm165, %v705, %v707
  %v712 = vadd.f32 %v671, %v708
  %v713 = vadd.f32 %v672, %v709
  %v714 = vperm.slane %v77, 3
  %716 = vrot.lane.b32.xlu0 %v714, 32
  %v717 = vpop.permute.xlu0 %716
  %v719 = vmul.f32 %v570, %v717
  %v720 = vmul.f32 %v589, %v717
  %v721 = vmul.f32 %v80, %v717
  %v722 = vmul.f32 %v87, %v717
  %v723 = vmul.f32 %v571, %v717
  %v724 = vmul.f32 %v590, %v717
  %v731 = vrot.slane %v719, 3
  %v732 = vrot.slane %v721, 3
  %v733 = vsel %vm579, %v731, %v732
  %v734 = vrot.slane %v720, 3
  %v735 = vrot.slane %v722, 3
  %v736 = vsel %vm579, %v734, %v735
  %v737 = vrot.slane %v723, 3
  %v738 = vsel %vm579, %v732, %v737
  %v739 = vrot.slane %v724, 3
  %v740 = vsel %vm579, %v735, %v739
  %741 = vrot.lane.b32.xlu0 %v733, 96
  %v742 = vpop.permute.xlu0 %741
  %743 = vrot.lane.b32.xlu0 %v736, 96
  %v744 = vpop.permute.xlu0 %743
  %745 = vrot.lane.b32.xlu0 %v738, 96
  %v746 = vpop.permute.xlu0 %745
  %747 = vrot.lane.b32.xlu0 %v740, 96
  %v748 = vpop.permute.xlu0 %747
  %v749 = vsel %vm193, %v742, %v744
  %v750 = vsel %vm193, %v746, %v748
  %v753 = vadd.f32 %v712, %v749
  %v754 = vadd.f32 %v713, %v750
  %v755 = vld [vmem:[#allocation2] sm:$0xf0]
  %v756 = vld [vmem:[#allocation2 + $0x20] sm:$0xf]
  %v757 = vperm.slane %v77, 4
  %v758 = vmul.f32 %v755, %v757
  %v759 = vmul.f32 %v80, %v757
  %v760 = vmul.f32 %v756, %v757
  %vm764 = vcmask 1043456
  %v765 = vrot.slane %v758, 4
  %v766 = vrot.slane %v759, 4
  %v767 = vsel %vm764, %v765, %v766
  %v768 = vrot.slane %v760, 4
  %v769 = vsel %vm764, %v766, %v768
  %v772 = vadd.f32 %v753, %v767
  %v773 = vadd.f32 %v754, %v769
  %v774 = vld [vmem:[#allocation2 + $0x8] sm:$0xf0]
  %v775 = vld [vmem:[#allocation2 + $0x28] sm:$0xf]
  %v776 = vperm.slane %v77, 5
  %778 = vrot.lane.b32.xlu0 %v776, 8
  %v779 = vpop.permute.xlu0 %778
  %v781 = vmul.f32 %v755, %v779
  %v782 = vmul.f32 %v774, %v779
  %v783 = vmul.f32 %v80, %v779
  %v784 = vmul.f32 %v87, %v779
  %v785 = vmul.f32 %v756, %v779
  %v786 = vmul.f32 %v775, %v779
  %v793 = vrot.slane %v781, 4
  %v794 = vrot.slane %v783, 4
  %v795 = vsel %vm764, %v793, %v794
  %v796 = vrot.slane %v782, 4
  %v797 = vrot.slane %v784, 4
  %v798 = vsel %vm764, %v796, %v797
  %v799 = vrot.slane %v785, 4
  %v800 = vsel %vm764, %v794, %v799
  %v801 = vrot.slane %v786, 4
  %v802 = vsel %vm764, %v797, %v801
  %803 = vrot.lane.b32.xlu0 %v795, 120
  %v804 = vpop.permute.xlu0 %803
  %805 = vrot.lane.b32.xlu0 %v798, 120
  %v806 = vpop.permute.xlu0 %805
  %807 = vrot.lane.b32.xlu0 %v800, 120
  %v808 = vpop.permute.xlu0 %807
  %809 = vrot.lane.b32.xlu0 %v802, 120
  %v810 = vpop.permute.xlu0 %809
  %v811 = vsel %vm109, %v804, %v806
  %v812 = vsel %vm109, %v808, %v810
  %v815 = vadd.f32 %v772, %v811
  %v816 = vadd.f32 %v773, %v812
  %v817 = vperm.slane %v77, 6
  %819 = vrot.lane.b32.xlu0 %v817, 16
  %v820 = vpop.permute.xlu0 %819
  %v822 = vmul.f32 %v755, %v820
  %v823 = vmul.f32 %v774, %v820
  %v824 = vmul.f32 %v80, %v820
  %v825 = vmul.f32 %v87, %v820
  %v826 = vmul.f32 %v756, %v820
  %v827 = vmul.f32 %v775, %v820
  %v834 = vrot.slane %v822, 4
  %v835 = vrot.slane %v824, 4
  %v836 = vsel %vm764, %v834, %v835
  %v837 = vrot.slane %v823, 4
  %v838 = vrot.slane %v825, 4
  %v839 = vsel %vm764, %v837, %v838
  %v840 = vrot.slane %v826, 4
  %v841 = vsel %vm764, %v835, %v840
  %v842 = vrot.slane %v827, 4
  %v843 = vsel %vm764, %v838, %v842
  %844 = vrot.lane.b32.xlu0 %v836, 112
  %v845 = vpop.permute.xlu0 %844
  %846 = vrot.lane.b32.xlu0 %v839, 112
  %v847 = vpop.permute.xlu0 %846
  %848 = vrot.lane.b32.xlu0 %v841, 112
  %v849 = vpop.permute.xlu0 %848
  %850 = vrot.lane.b32.xlu0 %v843, 112
  %v851 = vpop.permute.xlu0 %850
  %v852 = vsel %vm137, %v845, %v847
  %v853 = vsel %vm137, %v849, %v851
  %v856 = vadd.f32 %v815, %v852
  %v857 = vadd.f32 %v816, %v853
  %v858 = vperm.slane %v77, 7
  %860 = vrot.lane.b32.xlu0 %v858, 24
  %v861 = vpop.permute.xlu0 %860
  %v863 = vmul.f32 %v755, %v861
  %v864 = vmul.f32 %v774, %v861
  %v865 = vmul.f32 %v80, %v861
  %v866 = vmul.f32 %v87, %v861
  %v867 = vmul.f32 %v756, %v861
  %v868 = vmul.f32 %v775, %v861
  %v875 = vrot.slane %v863, 4
  %v876 = vrot.slane %v865, 4
  %v877 = vsel %vm764, %v875, %v876
  %v878 = vrot.slane %v864, 4
  %v879 = vrot.slane %v866, 4
  %v880 = vsel %vm764, %v878, %v879
  %v881 = vrot.slane %v867, 4
  %v882 = vsel %vm764, %v876, %v881
  %v883 = vrot.slane %v868, 4
  %v884 = vsel %vm764, %v879, %v883
  %885 = vrot.lane.b32.xlu0 %v877, 104
  %v886 = vpop.permute.xlu0 %885
  %887 = vrot.lane.b32.xlu0 %v880, 104
  %v888 = vpop.permute.xlu0 %887
  %889 = vrot.lane.b32.xlu0 %v882, 104
  %v890 = vpop.permute.xlu0 %889
  %891 = vrot.lane.b32.xlu0 %v884, 104
  %v892 = vpop.permute.xlu0 %891
  %v893 = vsel %vm165, %v886, %v888
  %v894 = vsel %vm165, %v890, %v892
  %v897 = vadd.f32 %v856, %v893
  %v898 = vadd.f32 %v857, %v894
  %v899 = vperm.slane %v78, 0
  %901 = vrot.lane.b32.xlu0 %v899, 32
  %v902 = vpop.permute.xlu0 %901
  %v904 = vmul.f32 %v755, %v902
  %v905 = vmul.f32 %v774, %v902
  %v906 = vmul.f32 %v80, %v902
  %v907 = vmul.f32 %v87, %v902
  %v908 = vmul.f32 %v756, %v902
  %v909 = vmul.f32 %v775, %v902
  %v916 = vrot.slane %v904, 4
  %v917 = vrot.slane %v906, 4
  %v918 = vsel %vm764, %v916, %v917
  %v919 = vrot.slane %v905, 4
  %v920 = vrot.slane %v907, 4
  %v921 = vsel %vm764, %v919, %v920
  %v922 = vrot.slane %v908, 4
  %v923 = vsel %vm764, %v917, %v922
  %v924 = vrot.slane %v909, 4
  %v925 = vsel %vm764, %v920, %v924
  %926 = vrot.lane.b32.xlu0 %v918, 96
  %v927 = vpop.permute.xlu0 %926
  %928 = vrot.lane.b32.xlu0 %v921, 96
  %v929 = vpop.permute.xlu0 %928
  %930 = vrot.lane.b32.xlu0 %v923, 96
  %v931 = vpop.permute.xlu0 %930
  %932 = vrot.lane.b32.xlu0 %v925, 96
  %v933 = vpop.permute.xlu0 %932
  %v934 = vsel %vm193, %v927, %v929
  %v935 = vsel %vm193, %v931, %v933
  %v938 = vadd.f32 %v897, %v934
  %v939 = vadd.f32 %v898, %v935
  %v940 = vld [vmem:[%s2] sm:$0x1]
  %v942 = vperm.slane %v940, 0
  %v944 = vadd.f32 %v938, %v942
  %v945 = vadd.f32 %v939, %v942
  %vm948 = vcmask 1042432
  %v949 = vrot.slane %v944, 5
  %v950 = vrot.slane %v945, 5
  %v951 = vsel %vm948, %v949, %v950
  %952 = vrot.lane.b32.xlu0 %v949, 24
  %v953 = vpop.permute.xlu0 %952
  %954 = vrot.lane.b32.xlu0 %v951, 24
  %v955 = vpop.permute.xlu0 %954
  %956 = vrot.lane.b32.xlu0 %v950, 24
  %v957 = vpop.permute.xlu0 %956
  %vm961 = vcmask 1047747
  %962 = vst.msk [vmem:[#allocation3] sm:$0xf8] %vm961, %v953
  %vm963 = vcmask 195587
  %964 = vst.msk [vmem:[#allocation3 + $0x8] sm:$0xf8] %vm963, %v953
  %vm965 = vcmask 1047744
  %966 = vst.msk [vmem:[#allocation3 + $0x10] sm:$0xff] %vm965, %v955
  %vm967 = vcmask 195584
  %968 = vst.msk [vmem:[#allocation3 + $0x18] sm:$0xff] %vm967, %v955
  %vm969 = vcmask 1042624
  %970 = vst.msk [vmem:[#allocation3 + $0x20] sm:$0x7] %vm969, %v957
  %vm971 = vcmask 190464
  %972 = vst.msk [vmem:[#allocation3 + $0x28] sm:$0x7] %vm971, %v957
  %v973 = vld [vmem:[%s3] sm:$0xff]
  %v974 = vld [vmem:[%s3 + $0x8] sm:$0x1]
  %v975 = vld [vmem:[#allocation3] sm:$0xff]
  %v976 = vld [vmem:[#allocation3 + $0x10] sm:$0xff]
  %v977 = vperm.slane %v973, 0
  %v978 = vmul.f32 %v975, %v977
  %v979 = vmul.f32 %v976, %v977
  %v980 = vadd.f32 %v978, 0.0
  %v981 = vadd.f32 %v979, 0.0
  %v982 = vld [vmem:[#allocation3 + $0x8] sm:$0xff]
  %v983 = vld [vmem:[#allocation3 + $0x18] sm:$0xff]
  %v984 = vperm.slane %v973, 1
  %986 = vrot.lane.b32.xlu0 %v984, 24
  %v987 = vpop.permute.xlu0 %986
  %v989 = vmul.f32 %v975, %v987
  %v990 = vmul.f32 %v982, %v987
  %v991 = vmul.f32 %v976, %v987
  %v992 = vmul.f32 %v983, %v987
  %997 = vrot.lane.b32.xlu0 %v989, 104
  %v998 = vpop.permute.xlu0 %997
  %999 = vrot.lane.b32.xlu0 %v990, 104
  %v1000 = vpop.permute.xlu0 %999
  %1001 = vrot.lane.b32.xlu0 %v991, 104
  %v1002 = vpop.permute.xlu0 %1001
  %1003 = vrot.lane.b32.xlu0 %v992, 104
  %v1004 = vpop.permute.xlu0 %1003
  %v1005 = vsel %vm165, %v998, %v1000
  %v1006 = vsel %vm165, %v1002, %v1004
  %v1009 = vadd.f32 %v980, %v1005
  %v1010 = vadd.f32 %v981, %v1006
  %v1011 = vperm.slane %v973, 2
  %1013 = vrot.lane.b32.xlu0 %v1011, 48
  %v1014 = vpop.permute.xlu0 %1013
  %v1016 = vmul.f32 %v975, %v1014
  %v1017 = vmul.f32 %v982, %v1014
  %v1018 = vmul.f32 %v976, %v1014
  %v1019 = vmul.f32 %v983, %v1014
  %1024 = vrot.lane.b32.xlu0 %v1016, 80
  %v1025 = vpop.permute.xlu0 %1024
  %1026 = vrot.lane.b32.xlu0 %v1017, 80
  %v1027 = vpop.permute.xlu0 %1026
  %1028 = vrot.lane.b32.xlu0 %v1018, 80
  %v1029 = vpop.permute.xlu0 %1028
  %1030 = vrot.lane.b32.xlu0 %v1019, 80
  %v1031 = vpop.permute.xlu0 %1030
  %vm1032 = vcmask 654336
  %v1033 = vsel %vm1032, %v1025, %v1027
  %v1034 = vsel %vm1032, %v1029, %v1031
  %v1037 = vadd.f32 %v1009, %v1033
  %v1038 = vadd.f32 %v1010, %v1034
  %v1039 = vld [vmem:[#allocation3] sm:$0xf8]
  %v1040 = vld [vmem:[#allocation3 + $0x20] sm:$0x7]
  %v1041 = vperm.slane %v973, 3
  %v1042 = vmul.f32 %v1039, %v1041
  %v1043 = vmul.f32 %v976, %v1041
  %v1044 = vmul.f32 %v1040, %v1041
  %v1048 = vrot.slane %v1042, 3
  %v1049 = vrot.slane %v1043, 3
  %v1050 = vsel %vm579, %v1048, %v1049
  %v1051 = vrot.slane %v1044, 3
  %v1052 = vsel %vm579, %v1049, %v1051
  %v1055 = vadd.f32 %v1037, %v1050
  %v1056 = vadd.f32 %v1038, %v1052
  %v1057 = vld [vmem:[#allocation3 + $0x8] sm:$0xf8]
  %v1058 = vld [vmem:[#allocation3 + $0x28] sm:$0x7]
  %v1059 = vperm.slane %v973, 4
  %1061 = vrot.lane.b32.xlu0 %v1059, 24
  %v1062 = vpop.permute.xlu0 %1061
  %v1064 = vmul.f32 %v1039, %v1062
  %v1065 = vmul.f32 %v1057, %v1062
  %v1066 = vmul.f32 %v976, %v1062
  %v1067 = vmul.f32 %v983, %v1062
  %v1068 = vmul.f32 %v1040, %v1062
  %v1069 = vmul.f32 %v1058, %v1062
  %v1076 = vrot.slane %v1064, 3
  %v1077 = vrot.slane %v1066, 3
  %v1078 = vsel %vm579, %v1076, %v1077
  %v1079 = vrot.slane %v1065, 3
  %v1080 = vrot.slane %v1067, 3
  %v1081 = vsel %vm579, %v1079, %v1080
  %v1082 = vrot.slane %v1068, 3
  %v1083 = vsel %vm579, %v1077, %v1082
  %v1084 = vrot.slane %v1069, 3
  %v1085 = vsel %vm579, %v1080, %v1084
  %1086 = vrot.lane.b32.xlu0 %v1078, 104
  %v1087 = vpop.permute.xlu0 %1086
  %1088 = vrot.lane.b32.xlu0 %v1081, 104
  %v1089 = vpop.permute.xlu0 %1088
  %1090 = vrot.lane.b32.xlu0 %v1083, 104
  %v1091 = vpop.permute.xlu0 %1090
  %1092 = vrot.lane.b32.xlu0 %v1085, 104
  %v1093 = vpop.permute.xlu0 %1092
  %v1094 = vsel %vm165, %v1087, %v1089
  %v1095 = vsel %vm165, %v1091, %v1093
  %v1098 = vadd.f32 %v1055, %v1094
  %v1099 = vadd.f32 %v1056, %v1095
  %v1100 = vperm.slane %v973, 5
  %1102 = vrot.lane.b32.xlu0 %v1100, 48
  %v1103 = vpop.permute.xlu0 %1102
  %v1105 = vmul.f32 %v1039, %v1103
  %v1106 = vmul.f32 %v1057, %v1103
  %v1107 = vmul.f32 %v976, %v1103
  %v1108 = vmul.f32 %v983, %v1103
  %v1109 = vmul.f32 %v1040, %v1103
  %v1110 = vmul.f32 %v1058, %v1103
  %v1117 = vrot.slane %v1105, 3
  %v1118 = vrot.slane %v1107, 3
  %v1119 = vsel %vm579, %v1117, %v1118
  %v1120 = vrot.slane %v1106, 3
  %v1121 = vrot.slane %v1108, 3
  %v1122 = vsel %vm579, %v1120, %v1121
  %v1123 = vrot.slane %v1109, 3
  %v1124 = vsel %vm579, %v1118, %v1123
  %v1125 = vrot.slane %v1110, 3
  %v1126 = vsel %vm579, %v1121, %v1125
  %1127 = vrot.lane.b32.xlu0 %v1119, 80
  %v1128 = vpop.permute.xlu0 %1127
  %1129 = vrot.lane.b32.xlu0 %v1122, 80
  %v1130 = vpop.permute.xlu0 %1129
  %1131 = vrot.lane.b32.xlu0 %v1124, 80
  %v1132 = vpop.permute.xlu0 %1131
  %1133 = vrot.lane.b32.xlu0 %v1126, 80
  %v1134 = vpop.permute.xlu0 %1133
  %v1135 = vsel %vm1032, %v1128, %v1130
  %v1136 = vsel %vm1032, %v1132, %v1134
  %v1139 = vadd.f32 %v1098, %v1135
  %v1140 = vadd.f32 %v1099, %v1136
  %v1141 = vld [vmem:[#allocation3] sm:$0xc0]
  %v1142 = vld [vmem:[#allocation3 + $0x20] sm:$0x3f]
  %v1143 = vperm.slane %v973, 6
  %v1144 = vmul.f32 %v1141, %v1143
  %v1145 = vmul.f32 %v976, %v1143
  %v1146 = vmul.f32 %v1142, %v1143
  %v1150 = vrot.slane %v1144, 6
  %v1151 = vrot.slane %v1145, 6
  %v1152 = vsel %vm50, %v1150, %v1151
  %v1153 = vrot.slane %v1146, 6
  %v1154 = vsel %vm50, %v1151, %v1153
  %v1157 = vadd.f32 %v1139, %v1152
  %v1158 = vadd.f32 %v1140, %v1154
  %v1159 = vld [vmem:[#allocation3 + $0x8] sm:$0xc0]
  %v1160 = vld [vmem:[#allocation3 + $0x28] sm:$0x3f]
  %v1161 = vperm.slane %v973, 7
  %1163 = vrot.lane.b32.xlu0 %v1161, 24
  %v1164 = vpop.permute.xlu0 %1163
  %v1166 = vmul.f32 %v1141, %v1164
  %v1167 = vmul.f32 %v1159, %v1164
  %v1168 = vmul.f32 %v976, %v1164
  %v1169 = vmul.f32 %v983, %v1164
  %v1170 = vmul.f32 %v1142, %v1164
  %v1171 = vmul.f32 %v1160, %v1164
  %v1178 = vrot.slane %v1166, 6
  %v1179 = vrot.slane %v1168, 6
  %v1180 = vsel %vm50, %v1178, %v1179
  %v1181 = vrot.slane %v1167, 6
  %v1182 = vrot.slane %v1169, 6
  %v1183 = vsel %vm50, %v1181, %v1182
  %v1184 = vrot.slane %v1170, 6
  %v1185 = vsel %vm50, %v1179, %v1184
  %v1186 = vrot.slane %v1171, 6
  %v1187 = vsel %vm50, %v1182, %v1186
  %1188 = vrot.lane.b32.xlu0 %v1180, 104
  %v1189 = vpop.permute.xlu0 %1188
  %1190 = vrot.lane.b32.xlu0 %v1183, 104
  %v1191 = vpop.permute.xlu0 %1190
  %1192 = vrot.lane.b32.xlu0 %v1185, 104
  %v1193 = vpop.permute.xlu0 %1192
  %1194 = vrot.lane.b32.xlu0 %v1187, 104
  %v1195 = vpop.permute.xlu0 %1194
  %v1196 = vsel %vm165, %v1189, %v1191
  %v1197 = vsel %vm165, %v1193, %v1195
  %v1200 = vadd.f32 %v1157, %v1196
  %v1201 = vadd.f32 %v1158, %v1197
  %v1202 = vperm.slane %v974, 0
  %1204 = vrot.lane.b32.xlu0 %v1202, 48
  %v1205 = vpop.permute.xlu0 %1204
  %v1207 = vmul.f32 %v1141, %v1205
  %v1208 = vmul.f32 %v1159, %v1205
  %v1209 = vmul.f32 %v976, %v1205
  %v1210 = vmul.f32 %v983, %v1205
  %v1211 = vmul.f32 %v1142, %v1205
  %v1212 = vmul.f32 %v1160, %v1205
  %v1219 = vrot.slane %v1207, 6
  %v1220 = vrot.slane %v1209, 6
  %v1221 = vsel %vm50, %v1219, %v1220
  %v1222 = vrot.slane %v1208, 6
  %v1223 = vrot.slane %v1210, 6
  %v1224 = vsel %vm50, %v1222, %v1223
  %v1225 = vrot.slane %v1211, 6
  %v1226 = vsel %vm50, %v1220, %v1225
  %v1227 = vrot.slane %v1212, 6
  %v1228 = vsel %vm50, %v1223, %v1227
  %1229 = vrot.lane.b32.xlu0 %v1221, 80
  %v1230 = vpop.permute.xlu0 %1229
  %1231 = vrot.lane.b32.xlu0 %v1224, 80
  %v1232 = vpop.permute.xlu0 %1231
  %1233 = vrot.lane.b32.xlu0 %v1226, 80
  %v1234 = vpop.permute.xlu0 %1233
  %1235 = vrot.lane.b32.xlu0 %v1228, 80
  %v1236 = vpop.permute.xlu0 %1235
  %v1237 = vsel %vm1032, %v1230, %v1232
  %v1238 = vsel %vm1032, %v1234, %v1236
  %v1241 = vadd.f32 %v1200, %v1237
  %v1242 = vadd.f32 %v1201, %v1238
  %v1243 = vld [vmem:[%s4] sm:$0x1]
  %v1245 = vperm.slane %v1243, 0
  %v1247 = vadd.f32 %v1241, %v1245
  %v1248 = vadd.f32 %v1242, %v1245
  %v1249 = vld [vmem:[%s5] sm:$0xff]
  %v1250 = vld [vmem:[%s5 + $0x8] sm:$0xff]
  %v1251 = vld [vmem:[%s5 + $0x10] sm:$0xff]
  %v1252 = vld [vmem:[%s5 + $0x18] sm:$0xff]
  %v1253 = vld [vmem:[%s5 + $0x20] sm:$0xff]
  %v1254 = vld [vmem:[%s5 + $0x28] sm:$0xff]
  %v1255 = vld [vmem:[%s5 + $0x30] sm:$0xff]
  %v1256 = vld [vmem:[%s5 + $0x38] sm:$0xff]
  %v1257 = vld [vmem:[%s5 + $0x40] sm:$0xff]
  %v1258 = vld [vmem:[%s5 + $0x48] sm:$0xff]
  %v1259 = vld [vmem:[%s5 + $0x50] sm:$0xff]
  %v1260 = vld [vmem:[%s5 + $0x58] sm:$0xff]
  %v1261 = vld [vmem:[%s5 + $0x60] sm:$0xff]
  %v1262 = vld [vmem:[%s5 + $0x68] sm:$0xff]
  %v1263 = vld [vmem:[%s5 + $0x70] sm:$0xff]
  %v1264 = vld [vmem:[%s5 + $0x78] sm:$0xff]
  %v1265 = vld [vmem:[%s5 + $0x80] sm:$0xff]
  %v1266 = vld [vmem:[%s5 + $0x88] sm:$0xff]
  %v1267 = vld [vmem:[%s5 + $0x90] sm:$0xff]
  %v1268 = vld [vmem:[%s5 + $0x98] sm:$0xff]
  %v1269 = vld [vmem:[%s5 + $0xa0] sm:$0xff]
  %v1270 = vld [vmem:[%s5 + $0xa8] sm:$0xff]
  %v1271 = vld [vmem:[%s5 + $0xb0] sm:$0xff]
  %v1272 = vld [vmem:[%s5 + $0xb8] sm:$0xff]
  %v1273 = vld [vmem:[%s5 + $0xc0] sm:$0xff]
  %v1274 = vld [vmem:[%s5 + $0xc8] sm:$0xff]
  %v1275 = vld [vmem:[%s5 + $0xd0] sm:$0xff]
  %v1276 = vld [vmem:[%s5 + $0xd8] sm:$0xff]
  %v1277 = vld [vmem:[%s5 + $0xe0] sm:$0xff]
  %v1278 = vld [vmem:[%s5 + $0xe8] sm:$0xff]
  %v1279 = vld [vmem:[%s5 + $0xf0] sm:$0xff]
  %v1280 = vld [vmem:[%s5 + $0xf8] sm:$0xff]
  %v1281 = vld [vmem:[%s6] sm:$0x3]
  %v1283 = vperm.slane %v1281, 0
  %v1284 = vperm.slane %v1281, 1
  %1287 = vmatpush.msra.mxu0 %v1279
  %1288 = vmatpush.msra.mxu0 %v1277
  %1289 = vmatpush.msra.mxu0 %v1275
  %1290 = vmatpush.msra.mxu0 %v1273
  %1291 = vmatpush.msra.mxu0 %v1271
  %1292 = vmatpush.msra.mxu0 %v1269
  %1293 = vmatpush.msra.mxu0 %v1267
  %1294 = vmatpush.msra.mxu0 %v1265
  %1295 = vmatpush.msra.mxu0 %v1263
  %1296 = vmatpush.msra.mxu0 %v1261
  %1297 = vmatpush.msra.mxu0 %v1259
  %1298 = vmatpush.msra.mxu0 %v1257
  %1299 = vmatpush.msra.mxu0 %v1255
  %1300 = vmatpush.msra.mxu0 %v1253
  %1301 = vmatpush.msra.mxu0 %v1251
  %1302 = vmatpush.msra.mxu0 %v1249
  %1303 = vmatmul.f32.gmra.mxu0 %v1247
  %v1304 = vpop.f32.mrf.mxu0
  %v1305 = vadd.f32 %v1283, %v1304
  %1306 = vmatmul.f32.gmra.mxu0 %v1248
  %v1307 = vpop.f32.mrf.mxu0
  %v1308 = vadd.f32 %v1283, %v1307
  %1309 = vdwg.mxu0
  %1310 = vmatpush.msra.mxu0 %v1280
  %1311 = vmatpush.msra.mxu0 %v1278
  %1312 = vmatpush.msra.mxu0 %v1276
  %1313 = vmatpush.msra.mxu0 %v1274
  %1314 = vmatpush.msra.mxu0 %v1272
  %1315 = vmatpush.msra.mxu0 %v1270
  %1316 = vmatpush.msra.mxu0 %v1268
  %1317 = vmatpush.msra.mxu0 %v1266
  %1318 = vmatpush.msra.mxu0 %v1264
  %1319 = vmatpush.msra.mxu0 %v1262
  %1320 = vmatpush.msra.mxu0 %v1260
  %1321 = vmatpush.msra.mxu0 %v1258
  %1322 = vmatpush.msra.mxu0 %v1256
  %1323 = vmatpush.msra.mxu0 %v1254
  %1324 = vmatpush.msra.mxu0 %v1252
  %1325 = vmatpush.msra.mxu0 %v1250
  %1326 = vmatmul.f32.gmra.mxu0 %v1247
  %v1327 = vpop.f32.mrf.mxu0
  %v1328 = vadd.f32 %v1284, %v1327
  %1329 = vmatmul.f32.gmra.mxu0 %v1248
  %v1330 = vpop.f32.mrf.mxu0
  %v1331 = vadd.f32 %v1284, %v1330
  %1332 = vdwg.mxu0
  %v1333 = vxor.u32 %v1328, 2147483648
  %v1334 = vxor.u32 %v1331, 2147483648
  %v1335 = vmul.f32 %v1333, 1.442695
  %v1336 = vpow.pop %v1335
  %v1337 = vmul.f32 %v1334, 1.442695
  %v1338 = vpow.pop %v1337
  %v1339 = vadd.f32 %v1336, 1.0
  %v1340 = vadd.f32 %v1338, 1.0
  %v1341 = vrcp.pop %v1339
  %v1342 = vmul.f32 %v1339, %v1341
  %v1343 = vsub.f32 1.0, %v1342
  %v1344 = vmul.f32 %v1341, %v1343
  %v1345 = vadd.f32 %v1341, %v1344
  %vm1346 = vweird.f32 %v1339
  %vm1347 = vweird.f32 %v1341
  %vm1348 = vmor %vm1346, %vm1347
  %v1349 = vsel %vm1348, %v1341, %v1345
  %v1350 = vand.u32 2147483647, %v1339
  %vm1351 = vcmp.eq.f32.partialorder %v1350, 8.507059e+37
  %v1352 = vand.u32 %v1339, 2147483648
  %v1353 = vor.u32 1.1754944e-38, %v1352
  %v1354 = vsel %vm1351, %v1353, %v1349
  %v1355 = vmul.f32 1.0, %v1354
  %v1356 = vrcp.pop %v1340
  %v1357 = vmul.f32 %v1340, %v1356
  %v1358 = vsub.f32 1.0, %v1357
  %v1359 = vmul.f32 %v1356, %v1358
  %v1360 = vadd.f32 %v1356, %v1359
  %vm1361 = vweird.f32 %v1340
  %vm1362 = vweird.f32 %v1356
  %vm1363 = vmor %vm1361, %vm1362
  %v1364 = vsel %vm1363, %v1356, %v1360
  %v1365 = vand.u32 2147483647, %v1340
  %vm1366 = vcmp.eq.f32.partialorder %v1365, 8.507059e+37
  %v1367 = vand.u32 %v1340, 2147483648
  %v1368 = vor.u32 1.1754944e-38, %v1367
  %v1369 = vsel %vm1366, %v1368, %v1364
  %v1370 = vmul.f32 1.0, %v1369
  %v1371 = vmul.f32 %v1355, %v1305
  %v1372 = vmul.f32 %v1370, %v1308
  %1373 = vst [vmem:[%s7] sm:$0xff] %v1371
  %1374 = vst [vmem:[%s7 + $0x8] sm:$0xff] %v1372
  // Predicated region
  $region34: #{apply.1} parent=0 // pred_check
    _
  $region35: #{apply.1} parent=0 // pred_check_branch
    %1376 = sbr.rel (0) target = $region37
  $region36: #{apply.1} parent=0 // pred_region
    _
  $region37: #{apply.1} parent=0 // pred_fallthru
    _
  // Predicated region
  $region38: #{apply.1} parent=0 // pred_check
    _
  $region39: #{apply.1} parent=0 // pred_check_branch
    %1378 = sbr.rel (0) target = $region41
  $region40: #{apply.1} parent=0 // pred_region
    _
  $region41: #{apply.1} parent=0 // pred_fallthru
    _

</llo_original>
